<compile_context>
chip_gen: v7x
topology: tpu7x:2x2x1
jax: 0.10.0
libtpu: 0.0.40
codegen_flags: <defaults>
</compile_context>

<pallas_src>
from functools import partial

import jax
import jax.numpy as jnp
from jax import lax
from jax.experimental import pallas as pl
from jax.experimental.pallas import tpu as pltpu


def _fused_attention_kernel(q_ref, k_ref, v_ref, mask_ref,
                            wq_ref, wk_ref, wv_ref, wfc_ref, bfc_ref,
                            out_ref, attn_ref, *, heads, head_dim,
                            q_len, kv_len):
    """One batch row, all heads fused.

    Refs (leading batch dim squeezed by the BlockSpecs):
      q_ref:    (H, Lq, D)  bf16   head-major query
      k_ref:    (H, Lk, D)  bf16
      v_ref:    (H, Lk, D)  bf16
      mask_ref: (Lq, Lk)    int32  (0 = masked out)
      wq_ref:   (D, D)      bf16   queries.weight.T * (1/sqrt(E))
      wk_ref:   (D, D)      bf16   keys.weight.T
      wv_ref:   (D, D)      bf16   values.weight.T
      wfc_ref:  (H, D, E)   bf16   fc_out.weight.T split per head
      bfc_ref:  (1, E)      f32    fc_out.bias
      out_ref:  (Lq, E)     f32
      attn_ref: (Lq, H*Lk)  f32    lane-dense attention probabilities
    """
    H, D = heads, head_dim

    def project(x_ref, w_ref, length):
        # Shared per-head Linear applied to all heads at once: flatten the
        # leading (H, L) dims into one MXU call (bf16 operands, f32 acc).
        x2 = x_ref[...].reshape(H * length, D)
        y2 = jnp.dot(x2, w_ref[...], preferred_element_type=jnp.float32)
        return y2.reshape(H, length, D)

    q = project(q_ref, wq_ref, q_len)       # 1/sqrt(E) already folded into wq
    k = project(k_ref, wk_ref, kv_len)
    v = project(v_ref, wv_ref, kv_len)

    # Head-batched scores: (H, Lq, D) x (H, Lk, D) -> (H, Lq, Lk), f32 acc.
    energy = lax.dot_general(q.astype(jnp.bfloat16), k.astype(jnp.bfloat16),
                             (((2,), (2,)), ((0,), (0,))),
                             preferred_element_type=jnp.float32)

    # Mask + softmax entirely in f32.  Fully-masked rows produce a uniform
    # distribution, matching the PyTorch masked_fill + softmax reference.
    masked = (mask_ref[...] == 0)[None, :, :]                  # (1, Lq, Lk)
    logits = jnp.where(masked, jnp.float32(-1e20), energy)
    m = jnp.max(logits, axis=-1, keepdims=True)
    p = jnp.exp(logits - m)
    denom = jnp.sum(p, axis=-1, keepdims=True)
    attn = p * pl.reciprocal(denom, approx=False)        # exact normalization

    # Lane-dense attention write-back: per-head static lane offsets into the
    # (Lq, H*Lk) block, so the HBM write-back DMA stays full-lane-width.
    for h in range(H):
        attn_ref[:, h * kv_len:(h + 1) * kv_len] = attn[h]

    # Head-batched attention @ V: (H, Lq, Lk) x (H, Lk, D) -> (H, Lq, D).
    ctx = lax.dot_general(attn.astype(jnp.bfloat16), v.astype(jnp.bfloat16),
                          (((2,), (1,)), ((0,), (0,))),
                          preferred_element_type=jnp.float32)

    # Fused fc_out with no concat/transpose: contract each head's (Lq, D)
    # context with its (D, E) slab of fc_out.weight.T, then sum over heads.
    per_head = lax.dot_general(ctx.astype(jnp.bfloat16), wfc_ref[...],
                               (((2,), (1,)), ((0,), (0,))),
                               preferred_element_type=jnp.float32)
    out_ref[...] = jnp.sum(per_head, axis=0) + bfc_ref[...]


def self_attention_forward(values, keys, query, mask, params, heads):
    """values/keys/query: (N, L, E) f32; mask: (N, Lq, Lk) (0 = masked out).

    Returns (out, attention) exactly like the PyTorch module:
      out:       (N, Lq, E)      f32
      attention: (N, H, Lq, Lk)  f32
    """
    N, v_len, E = values.shape
    k_len = keys.shape[1]
    q_len = query.shape[1]
    H = heads
    D = E // H
    assert H * D == E, "embed_size must be divisible by heads"
    assert k_len == v_len, "attention @ V requires key_len == value_len"

    # --- one-time host-side weight / layout plumbing (not kernel work) ---
    scale = jnp.float32(1.0 / (E ** 0.5))
    wq_t = (params["wq"].T * scale).astype(jnp.bfloat16)       # (D, D)
    wk_t = params["wk"].T.astype(jnp.bfloat16)                 # (D, D)
    wv_t = params["wv"].T.astype(jnp.bfloat16)                 # (D, D)
    wfc_h = params["w_fc"].T.reshape(H, D, E).astype(jnp.bfloat16)
    b_fc = params["b_fc"].reshape(1, E).astype(jnp.float32)

    def head_major(x, length):
        # (N, L, E) -> (N, H, L, D), bf16 (halves the kernel's input DMA).
        return x.reshape(N, length, H, D).transpose(0, 2, 1, 3).astype(jnp.bfloat16)

    q_hm = head_major(query, q_len)
    k_hm = head_major(keys, k_len)
    v_hm = head_major(values, v_len)
    mask_i32 = mask.astype(jnp.int32)

    kernel = partial(_fused_attention_kernel, heads=H, head_dim=D,
                     q_len=q_len, kv_len=k_len)

    out, attn_ld = pl.pallas_call(
        kernel,
        out_shape=(jax.ShapeDtypeStruct((N, q_len, E), jnp.float32),
                   jax.ShapeDtypeStruct((N, q_len, H * k_len), jnp.float32)),
        grid_spec=pltpu.PrefetchScalarGridSpec(
            num_scalar_prefetch=0,
            grid=(N,),
            in_specs=[
                pl.BlockSpec((None, H, q_len, D), lambda i: (i, 0, 0, 0)),
                pl.BlockSpec((None, H, k_len, D), lambda i: (i, 0, 0, 0)),
                pl.BlockSpec((None, H, v_len, D), lambda i: (i, 0, 0, 0)),
                pl.BlockSpec((None, q_len, k_len), lambda i: (i, 0, 0)),
                pl.BlockSpec((D, D), lambda i: (0, 0)),
                pl.BlockSpec((D, D), lambda i: (0, 0)),
                pl.BlockSpec((D, D), lambda i: (0, 0)),
                pl.BlockSpec((H, D, E), lambda i: (0, 0, 0)),
                pl.BlockSpec((1, E), lambda i: (0, 0)),
            ],
            out_specs=[
                pl.BlockSpec((None, q_len, E), lambda i: (i, 0, 0)),
                pl.BlockSpec((None, q_len, H * k_len), lambda i: (i, 0, 0)),
            ],
        ),
        compiler_params=pltpu.CompilerParams(
            dimension_semantics=("parallel",),     # batch axis -> 2 TCs on v7x
            vmem_limit_bytes=32 * 1024 * 1024),
    )(q_hm, k_hm, v_hm, mask_i32, wq_t, wk_t, wv_t, wfc_h, b_fc)

    # Lane-dense kernel output -> the module's (N, H, Lq, Lk) layout.
    attn = attn_ld.reshape(N, q_len, H, k_len).transpose(0, 2, 1, 3)
    return out, attn


def reference_forward(values, keys, query, mask, params, heads):
    """Pure-JAX f32 reference mirroring the PyTorch forward exactly."""
    N, v_len, E = values.shape
    k_len, q_len = keys.shape[1], query.shape[1]
    D = E // heads
    v = values.reshape(N, v_len, heads, D) @ params["wv"].T
    k = keys.reshape(N, k_len, heads, D) @ params["wk"].T
    q = query.reshape(N, q_len, heads, D) @ params["wq"].T
    energy = jnp.einsum('nqhd,nkhd->nhqk', q, k)
    energy = jnp.where(mask[:, None, :, :] == 0, jnp.float32(-1e20), energy)
    attn = jax.nn.softmax(energy / (E ** 0.5), axis=3)
    out = jnp.einsum('nhql,nlhd->nqhd', attn, v).reshape(N, q_len, E)
    out = out @ params["w_fc"].T + params["b_fc"]
    return out, attn


if __name__ == "__main__":
    # batch=2, seq=16, embed_size=128 (lane-dense), heads=8 (module default)
    N, L, E, H = 2, 16, 128, 8
    D = E // H

    key = jax.random.PRNGKey(0)
    ks = jax.random.split(key, 8)
    values = jax.random.normal(ks[0], (N, L, E), jnp.float32)
    keys_in = jax.random.normal(ks[1], (N, L, E), jnp.float32)
    query = jax.random.normal(ks[2], (N, L, E), jnp.float32)

    params = {
        "wq": jax.random.normal(ks[3], (D, D), jnp.float32) * 0.1,
        "wk": jax.random.normal(ks[4], (D, D), jnp.float32) * 0.1,
        "wv": jax.random.normal(ks[5], (D, D), jnp.float32) * 0.1,
        "w_fc": jax.random.normal(ks[6], (E, E), jnp.float32) * 0.1,
        "b_fc": jax.random.normal(ks[7], (E,), jnp.float32) * 0.1,
    }

    # Mask: (N, Lq, Lk); zeros are masked out (as in masked_fill(mask == 0, ...)).
    mask = jnp.tril(jnp.ones((L, L), jnp.int32))[None].repeat(N, axis=0)

    out, attn = self_attention_forward(values, keys_in, query, mask, params, H)
    out, attn = jax.block_until_ready((out, attn))

    ref_out, ref_attn = reference_forward(values, keys_in, query, mask, params, H)
    assert out.shape == (N, L, E) and attn.shape == (N, H, L, L)
    # Tolerances account for bf16 MXU operands (f32 accumulation); the softmax
    # itself is computed in f32 with an exact reciprocal.
    assert jnp.allclose(attn, ref_attn, atol=5e-3, rtol=5e-3)
    assert jnp.allclose(out, ref_out, atol=1e-2, rtol=1e-2)
    # Attention rows sum to 1 (exact normalization on the attn output path).
    assert jnp.allclose(attn.sum(-1), 1.0, atol=1e-4)

    print("KERNEL_OK")
</pallas_src>

<mosaic_0001>
module attributes {stable_mosaic.version = 11 : i64} {
  func.func @_fused_attention_kernel(%arg0: i32, %arg1: memref<1x8x16x16xbf16, #tpu.memory_space<vmem>>, %arg2: memref<1x8x16x16xbf16, #tpu.memory_space<vmem>>, %arg3: memref<1x8x16x16xbf16, #tpu.memory_space<vmem>>, %arg4: memref<1x16x16xi32, #tpu.memory_space<vmem>>, %arg5: memref<16x16xbf16, #tpu.memory_space<vmem>>, %arg6: memref<16x16xbf16, #tpu.memory_space<vmem>>, %arg7: memref<16x16xbf16, #tpu.memory_space<vmem>>, %arg8: memref<8x16x128xbf16, #tpu.memory_space<vmem>>, %arg9: memref<1x128xf32, #tpu.memory_space<vmem>>, %arg10: memref<1x16x128xf32, #tpu.memory_space<vmem>>, %arg11: memref<1x16x128xf32, #tpu.memory_space<vmem>>) attributes {dimension_semantics = [#tpu.dimension_semantics<parallel>], iteration_bounds = array<i64: 2>, scalar_prefetch = 0 : i64, scratch_operands = 0 : i64, tpu.core_type = #tpu.core_type<tc>, window_params = [{transform_indices = @transform_0, window_bounds = array<i64: 1, 8, 16, 16>}, {transform_indices = @transform_1, window_bounds = array<i64: 1, 8, 16, 16>}, {transform_indices = @transform_2, window_bounds = array<i64: 1, 8, 16, 16>}, {transform_indices = @transform_3, window_bounds = array<i64: 1, 16, 16>}, {pipeline_mode = #tpu.pipeline_mode<synchronous>, transform_indices = @transform_4, window_bounds = array<i64: 16, 16>}, {pipeline_mode = #tpu.pipeline_mode<synchronous>, transform_indices = @transform_5, window_bounds = array<i64: 16, 16>}, {pipeline_mode = #tpu.pipeline_mode<synchronous>, transform_indices = @transform_6, window_bounds = array<i64: 16, 16>}, {pipeline_mode = #tpu.pipeline_mode<synchronous>, transform_indices = @transform_7, window_bounds = array<i64: 8, 16, 128>}, {pipeline_mode = #tpu.pipeline_mode<synchronous>, transform_indices = @transform_8, window_bounds = array<i64: 1, 128>}, {transform_indices = @transform_9, window_bounds = array<i64: 1, 16, 128>}, {transform_indices = @transform_10, window_bounds = array<i64: 1, 16, 128>}]} {
    %c0 = arith.constant 0 : index
    %c0_0 = arith.constant 0 : index
    %c0_1 = arith.constant 0 : index
    %c0_2 = arith.constant 0 : index
    %0 = vector.load %arg1[%c0, %c0_0, %c0_1, %c0_2] : memref<1x8x16x16xbf16, #tpu.memory_space<vmem>>, vector<1x8x16x16xbf16>
    %1 = vector.shape_cast %0 : vector<1x8x16x16xbf16> to vector<8x16x16xbf16>
    %2 = vector.shape_cast %1 : vector<8x16x16xbf16> to vector<128x16xbf16>
    %c0_3 = arith.constant 0 : index
    %c0_4 = arith.constant 0 : index
    %3 = vector.load %arg5[%c0_3, %c0_4] : memref<16x16xbf16, #tpu.memory_space<vmem>>, vector<16x16xbf16>
    %cst = arith.constant dense<0.000000e+00> : vector<128x16xf32>
    %4 = tpu.matmul %2, %3, %cst {dimension_numbers = #tpu.dot_dimension_numbers<[1], [0], [0], [1], [0, 0, 1, 1], [], []>} : vector<128x16xbf16>, vector<16x16xbf16>, vector<128x16xf32> -> vector<128x16xf32>
    %5 = vector.shape_cast %4 : vector<128x16xf32> to vector<8x16x16xf32>
    %c0_5 = arith.constant 0 : index
    %c0_6 = arith.constant 0 : index
    %c0_7 = arith.constant 0 : index
    %c0_8 = arith.constant 0 : index
    %6 = vector.load %arg2[%c0_5, %c0_6, %c0_7, %c0_8] : memref<1x8x16x16xbf16, #tpu.memory_space<vmem>>, vector<1x8x16x16xbf16>
    %7 = vector.shape_cast %6 : vector<1x8x16x16xbf16> to vector<8x16x16xbf16>
    %8 = vector.shape_cast %7 : vector<8x16x16xbf16> to vector<128x16xbf16>
    %c0_9 = arith.constant 0 : index
    %c0_10 = arith.constant 0 : index
    %9 = vector.load %arg6[%c0_9, %c0_10] : memref<16x16xbf16, #tpu.memory_space<vmem>>, vector<16x16xbf16>
    %cst_11 = arith.constant dense<0.000000e+00> : vector<128x16xf32>
    %10 = tpu.matmul %8, %9, %cst_11 {dimension_numbers = #tpu.dot_dimension_numbers<[1], [0], [0], [1], [0, 0, 1, 1], [], []>} : vector<128x16xbf16>, vector<16x16xbf16>, vector<128x16xf32> -> vector<128x16xf32>
    %11 = vector.shape_cast %10 : vector<128x16xf32> to vector<8x16x16xf32>
    %c0_12 = arith.constant 0 : index
    %c0_13 = arith.constant 0 : index
    %c0_14 = arith.constant 0 : index
    %c0_15 = arith.constant 0 : index
    %12 = vector.load %arg3[%c0_12, %c0_13, %c0_14, %c0_15] : memref<1x8x16x16xbf16, #tpu.memory_space<vmem>>, vector<1x8x16x16xbf16>
    %13 = vector.shape_cast %12 : vector<1x8x16x16xbf16> to vector<8x16x16xbf16>
    %14 = vector.shape_cast %13 : vector<8x16x16xbf16> to vector<128x16xbf16>
    %c0_16 = arith.constant 0 : index
    %c0_17 = arith.constant 0 : index
    %15 = vector.load %arg7[%c0_16, %c0_17] : memref<16x16xbf16, #tpu.memory_space<vmem>>, vector<16x16xbf16>
    %cst_18 = arith.constant dense<0.000000e+00> : vector<128x16xf32>
    %16 = tpu.matmul %14, %15, %cst_18 {dimension_numbers = #tpu.dot_dimension_numbers<[1], [0], [0], [1], [0, 0, 1, 1], [], []>} : vector<128x16xbf16>, vector<16x16xbf16>, vector<128x16xf32> -> vector<128x16xf32>
    %17 = vector.shape_cast %16 : vector<128x16xf32> to vector<8x16x16xf32>
    %18 = arith.truncf %5 : vector<8x16x16xf32> to vector<8x16x16xbf16>
    %19 = arith.truncf %11 : vector<8x16x16xf32> to vector<8x16x16xbf16>
    %cst_19 = arith.constant dense<0.000000e+00> : vector<8x16x16xf32>
    %20 = tpu.matmul %18, %19, %cst_19 {dimension_numbers = #tpu.dot_dimension_numbers<[2], [2], [1], [1], [0, 0, 0, 1, 1, 1], [0], [0]>} : vector<8x16x16xbf16>, vector<8x16x16xbf16>, vector<8x16x16xf32> -> vector<8x16x16xf32>
    %c0_20 = arith.constant 0 : index
    %c0_21 = arith.constant 0 : index
    %c0_22 = arith.constant 0 : index
    %21 = vector.load %arg4[%c0_20, %c0_21, %c0_22] : memref<1x16x16xi32, #tpu.memory_space<vmem>>, vector<1x16x16xi32>
    %22 = vector.shape_cast %21 : vector<1x16x16xi32> to vector<16x16xi32>
    %c0_i32 = arith.constant 0 : i32
    %23 = vector.broadcast %c0_i32 : i32 to vector<16x16xi32>
    %24 = arith.cmpi eq, %22, %23 : vector<16x16xi32>
    %25 = vector.shape_cast %24 : vector<16x16xi1> to vector<1x16x16xi1>
    %cst_23 = arith.constant -1.000000e+20 : f32
    %26 = vector.shape_cast %25 : vector<1x16x16xi1> to vector<1x16x16xi1>
    %27 = vector.broadcast %26 : vector<1x16x16xi1> to vector<8x16x16xi1>
    %28 = vector.broadcast %cst_23 : f32 to vector<8x16x16xf32>
    %29 = arith.select %27, %28, %20 : vector<8x16x16xi1>, vector<8x16x16xf32>
    %cst_24 = arith.constant dense<0xFF800000> : vector<8x16xf32>
    %30 = vector.multi_reduction <maximumf>, %29, %cst_24 [2] : vector<8x16x16xf32> to vector<8x16xf32>
    %31 = vector.shape_cast %30 : vector<8x16xf32> to vector<8x16x1xf32>
    %32 = vector.broadcast %31 : vector<8x16x1xf32> to vector<8x16x16xf32>
    %33 = arith.subf %29, %32 : vector<8x16x16xf32>
    %34 = math.exp %33 : vector<8x16x16xf32>
    %cst_25 = arith.constant dense<0.000000e+00> : vector<8x16xf32>
    %35 = vector.multi_reduction <add>, %34, %cst_25 [2] : vector<8x16x16xf32> to vector<8x16xf32>
    %36 = vector.shape_cast %35 : vector<8x16xf32> to vector<8x16x1xf32>
    %37 = tpu.reciprocal %36 : vector<8x16x1xf32> -> vector<8x16x1xf32>
    %38 = vector.broadcast %37 : vector<8x16x1xf32> to vector<8x16x16xf32>
    %39 = arith.mulf %34, %38 : vector<8x16x16xf32>
    %40 = vector.extract_strided_slice %39 {offsets = [0, 0, 0], sizes = [1, 16, 16], strides = [1, 1, 1]} : vector<8x16x16xf32> to vector<1x16x16xf32>
    %41 = vector.shape_cast %40 : vector<1x16x16xf32> to vector<16x16xf32>
    %c0_26 = arith.constant 0 : index
    %c0_27 = arith.constant 0 : index
    %c0_28 = arith.constant 0 : index
    %42 = vector.load %arg11[%c0_26, %c0_27, %c0_28] : memref<1x16x128xf32, #tpu.memory_space<vmem>>, vector<1x16x16xf32>
    %43 = vector.shape_cast %42 : vector<1x16x16xf32> to vector<16x16xf32>
    %44 = vector.shape_cast %41 : vector<16x16xf32> to vector<1x16x16xf32>
    tpu.vector_store %arg11[%c0_26, %c0_27, %c0_28], %44 {strides = array<i32>} : memref<1x16x128xf32, #tpu.memory_space<vmem>>, vector<1x16x16xf32>,
    %45 = vector.extract_strided_slice %39 {offsets = [1, 0, 0], sizes = [1, 16, 16], strides = [1, 1, 1]} : vector<8x16x16xf32> to vector<1x16x16xf32>
    %46 = vector.shape_cast %45 : vector<1x16x16xf32> to vector<16x16xf32>
    %c0_29 = arith.constant 0 : index
    %c0_30 = arith.constant 0 : index
    %c16 = arith.constant 16 : index
    %47 = vector.load %arg11[%c0_29, %c0_30, %c16] : memref<1x16x128xf32, #tpu.memory_space<vmem>>, vector<1x16x16xf32>
    %48 = vector.shape_cast %47 : vector<1x16x16xf32> to vector<16x16xf32>
    %49 = vector.shape_cast %46 : vector<16x16xf32> to vector<1x16x16xf32>
    tpu.vector_store %arg11[%c0_29, %c0_30, %c16], %49 {strides = array<i32>} : memref<1x16x128xf32, #tpu.memory_space<vmem>>, vector<1x16x16xf32>,
    %50 = vector.extract_strided_slice %39 {offsets = [2, 0, 0], sizes = [1, 16, 16], strides = [1, 1, 1]} : vector<8x16x16xf32> to vector<1x16x16xf32>
    %51 = vector.shape_cast %50 : vector<1x16x16xf32> to vector<16x16xf32>
    %c0_31 = arith.constant 0 : index
    %c0_32 = arith.constant 0 : index
    %c32 = arith.constant 32 : index
    %52 = vector.load %arg11[%c0_31, %c0_32, %c32] : memref<1x16x128xf32, #tpu.memory_space<vmem>>, vector<1x16x16xf32>
    %53 = vector.shape_cast %52 : vector<1x16x16xf32> to vector<16x16xf32>
    %54 = vector.shape_cast %51 : vector<16x16xf32> to vector<1x16x16xf32>
    tpu.vector_store %arg11[%c0_31, %c0_32, %c32], %54 {strides = array<i32>} : memref<1x16x128xf32, #tpu.memory_space<vmem>>, vector<1x16x16xf32>,
    %55 = vector.extract_strided_slice %39 {offsets = [3, 0, 0], sizes = [1, 16, 16], strides = [1, 1, 1]} : vector<8x16x16xf32> to vector<1x16x16xf32>
    %56 = vector.shape_cast %55 : vector<1x16x16xf32> to vector<16x16xf32>
    %c0_33 = arith.constant 0 : index
    %c0_34 = arith.constant 0 : index
    %c48 = arith.constant 48 : index
    %57 = vector.load %arg11[%c0_33, %c0_34, %c48] : memref<1x16x128xf32, #tpu.memory_space<vmem>>, vector<1x16x16xf32>
    %58 = vector.shape_cast %57 : vector<1x16x16xf32> to vector<16x16xf32>
    %59 = vector.shape_cast %56 : vector<16x16xf32> to vector<1x16x16xf32>
    tpu.vector_store %arg11[%c0_33, %c0_34, %c48], %59 {strides = array<i32>} : memref<1x16x128xf32, #tpu.memory_space<vmem>>, vector<1x16x16xf32>,
    %60 = vector.extract_strided_slice %39 {offsets = [4, 0, 0], sizes = [1, 16, 16], strides = [1, 1, 1]} : vector<8x16x16xf32> to vector<1x16x16xf32>
    %61 = vector.shape_cast %60 : vector<1x16x16xf32> to vector<16x16xf32>
    %c0_35 = arith.constant 0 : index
    %c0_36 = arith.constant 0 : index
    %c64 = arith.constant 64 : index
    %62 = vector.load %arg11[%c0_35, %c0_36, %c64] : memref<1x16x128xf32, #tpu.memory_space<vmem>>, vector<1x16x16xf32>
    %63 = vector.shape_cast %62 : vector<1x16x16xf32> to vector<16x16xf32>
    %64 = vector.shape_cast %61 : vector<16x16xf32> to vector<1x16x16xf32>
    tpu.vector_store %arg11[%c0_35, %c0_36, %c64], %64 {strides = array<i32>} : memref<1x16x128xf32, #tpu.memory_space<vmem>>, vector<1x16x16xf32>,
    %65 = vector.extract_strided_slice %39 {offsets = [5, 0, 0], sizes = [1, 16, 16], strides = [1, 1, 1]} : vector<8x16x16xf32> to vector<1x16x16xf32>
    %66 = vector.shape_cast %65 : vector<1x16x16xf32> to vector<16x16xf32>
    %c0_37 = arith.constant 0 : index
    %c0_38 = arith.constant 0 : index
    %c80 = arith.constant 80 : index
    %67 = vector.load %arg11[%c0_37, %c0_38, %c80] : memref<1x16x128xf32, #tpu.memory_space<vmem>>, vector<1x16x16xf32>
    %68 = vector.shape_cast %67 : vector<1x16x16xf32> to vector<16x16xf32>
    %69 = vector.shape_cast %66 : vector<16x16xf32> to vector<1x16x16xf32>
    tpu.vector_store %arg11[%c0_37, %c0_38, %c80], %69 {strides = array<i32>} : memref<1x16x128xf32, #tpu.memory_space<vmem>>, vector<1x16x16xf32>,
    %70 = vector.extract_strided_slice %39 {offsets = [6, 0, 0], sizes = [1, 16, 16], strides = [1, 1, 1]} : vector<8x16x16xf32> to vector<1x16x16xf32>
    %71 = vector.shape_cast %70 : vector<1x16x16xf32> to vector<16x16xf32>
    %c0_39 = arith.constant 0 : index
    %c0_40 = arith.constant 0 : index
    %c96 = arith.constant 96 : index
    %72 = vector.load %arg11[%c0_39, %c0_40, %c96] : memref<1x16x128xf32, #tpu.memory_space<vmem>>, vector<1x16x16xf32>
    %73 = vector.shape_cast %72 : vector<1x16x16xf32> to vector<16x16xf32>
    %74 = vector.shape_cast %71 : vector<16x16xf32> to vector<1x16x16xf32>
    tpu.vector_store %arg11[%c0_39, %c0_40, %c96], %74 {strides = array<i32>} : memref<1x16x128xf32, #tpu.memory_space<vmem>>, vector<1x16x16xf32>,
    %75 = vector.extract_strided_slice %39 {offsets = [7, 0, 0], sizes = [1, 16, 16], strides = [1, 1, 1]} : vector<8x16x16xf32> to vector<1x16x16xf32>
    %76 = vector.shape_cast %75 : vector<1x16x16xf32> to vector<16x16xf32>
    %c0_41 = arith.constant 0 : index
    %c0_42 = arith.constant 0 : index
    %c112 = arith.constant 112 : index
    %77 = vector.load %arg11[%c0_41, %c0_42, %c112] : memref<1x16x128xf32, #tpu.memory_space<vmem>>, vector<1x16x16xf32>
    %78 = vector.shape_cast %77 : vector<1x16x16xf32> to vector<16x16xf32>
    %79 = vector.shape_cast %76 : vector<16x16xf32> to vector<1x16x16xf32>
    tpu.vector_store %arg11[%c0_41, %c0_42, %c112], %79 {strides = array<i32>} : memref<1x16x128xf32, #tpu.memory_space<vmem>>, vector<1x16x16xf32>,
    %80 = arith.truncf %39 : vector<8x16x16xf32> to vector<8x16x16xbf16>
    %81 = arith.truncf %17 : vector<8x16x16xf32> to vector<8x16x16xbf16>
    %cst_43 = arith.constant dense<0.000000e+00> : vector<8x16x16xf32>
    %82 = tpu.matmul %80, %81, %cst_43 {dimension_numbers = #tpu.dot_dimension_numbers<[2], [1], [1], [2], [0, 0, 0, 1, 1, 2], [0], [0]>} : vector<8x16x16xbf16>, vector<8x16x16xbf16>, vector<8x16x16xf32> -> vector<8x16x16xf32>
    %83 = arith.truncf %82 : vector<8x16x16xf32> to vector<8x16x16xbf16>
    %c0_44 = arith.constant 0 : index
    %c0_45 = arith.constant 0 : index
    %c0_46 = arith.constant 0 : index
    %84 = vector.load %arg8[%c0_44, %c0_45, %c0_46] : memref<8x16x128xbf16, #tpu.memory_space<vmem>>, vector<8x16x128xbf16>
    %cst_47 = arith.constant dense<0.000000e+00> : vector<8x16x128xf32>
    %85 = tpu.matmul %83, %84, %cst_47 {dimension_numbers = #tpu.dot_dimension_numbers<[2], [1], [1], [2], [0, 0, 0, 1, 1, 2], [0], [0]>} : vector<8x16x16xbf16>, vector<8x16x128xbf16>, vector<8x16x128xf32> -> vector<8x16x128xf32>
    %cst_48 = arith.constant dense<0.000000e+00> : vector<16x128xf32>
    %86 = vector.multi_reduction <add>, %85, %cst_48 [0] : vector<8x16x128xf32> to vector<16x128xf32>
    %c0_49 = arith.constant 0 : index
    %c0_50 = arith.constant 0 : index
    %87 = vector.load %arg9[%c0_49, %c0_50] : memref<1x128xf32, #tpu.memory_space<vmem>>, vector<1x128xf32>
    %88 = vector.broadcast %87 : vector<1x128xf32> to vector<16x128xf32>
    %89 = arith.addf %86, %88 : vector<16x128xf32>
    %c0_51 = arith.constant 0 : index
    %c0_52 = arith.constant 0 : index
    %c0_53 = arith.constant 0 : index
    %90 = vector.load %arg10[%c0_51, %c0_52, %c0_53] : memref<1x16x128xf32, #tpu.memory_space<vmem>>, vector<1x16x128xf32>
    %91 = vector.shape_cast %90 : vector<1x16x128xf32> to vector<16x128xf32>
    %92 = vector.shape_cast %89 : vector<16x128xf32> to vector<1x16x128xf32>
    tpu.vector_store %arg10[%c0_51, %c0_52, %c0_53], %92 {strides = array<i32>} : memref<1x16x128xf32, #tpu.memory_space<vmem>>, vector<1x16x128xf32>,
    return
  }
  func.func @transform_0(%arg0: i32) -> (i32, i32, i32, i32) {
    %c0_i32 = arith.constant 0 : i32
    %c0_i32_0 = arith.constant 0 : i32
    %c0_i32_1 = arith.constant 0 : i32
    %c0_i32_2 = arith.constant 0 : i32
    return %arg0, %c0_i32, %c0_i32_0, %c0_i32_1 : i32, i32, i32, i32
  }
  func.func @transform_1(%arg0: i32) -> (i32, i32, i32, i32) {
    %c0_i32 = arith.constant 0 : i32
    %c0_i32_0 = arith.constant 0 : i32
    %c0_i32_1 = arith.constant 0 : i32
    %c0_i32_2 = arith.constant 0 : i32
    return %arg0, %c0_i32, %c0_i32_0, %c0_i32_1 : i32, i32, i32, i32
  }
  func.func @transform_2(%arg0: i32) -> (i32, i32, i32, i32) {
    %c0_i32 = arith.constant 0 : i32
    %c0_i32_0 = arith.constant 0 : i32
    %c0_i32_1 = arith.constant 0 : i32
    %c0_i32_2 = arith.constant 0 : i32
    return %arg0, %c0_i32, %c0_i32_0, %c0_i32_1 : i32, i32, i32, i32
  }
  func.func @transform_3(%arg0: i32) -> (i32, i32, i32) {
    %c0_i32 = arith.constant 0 : i32
    %c0_i32_0 = arith.constant 0 : i32
    %c0_i32_1 = arith.constant 0 : i32
    return %arg0, %c0_i32, %c0_i32_0 : i32, i32, i32
  }
  func.func @transform_4(%arg0: i32) -> (i32, i32) {
    %c0_i32 = arith.constant 0 : i32
    %c0_i32_0 = arith.constant 0 : i32
    %c0_i32_1 = arith.constant 0 : i32
    return %c0_i32, %c0_i32_0 : i32, i32
  }
  func.func @transform_5(%arg0: i32) -> (i32, i32) {
    %c0_i32 = arith.constant 0 : i32
    %c0_i32_0 = arith.constant 0 : i32
    %c0_i32_1 = arith.constant 0 : i32
    return %c0_i32, %c0_i32_0 : i32, i32
  }
  func.func @transform_6(%arg0: i32) -> (i32, i32) {
    %c0_i32 = arith.constant 0 : i32
    %c0_i32_0 = arith.constant 0 : i32
    %c0_i32_1 = arith.constant 0 : i32
    return %c0_i32, %c0_i32_0 : i32, i32
  }
  func.func @transform_7(%arg0: i32) -> (i32, i32, i32) {
    %c0_i32 = arith.constant 0 : i32
    %c0_i32_0 = arith.constant 0 : i32
    %c0_i32_1 = arith.constant 0 : i32
    %c0_i32_2 = arith.constant 0 : i32
    return %c0_i32, %c0_i32_0, %c0_i32_1 : i32, i32, i32
  }
  func.func @transform_8(%arg0: i32) -> (i32, i32) {
    %c0_i32 = arith.constant 0 : i32
    %c0_i32_0 = arith.constant 0 : i32
    %c0_i32_1 = arith.constant 0 : i32
    return %c0_i32, %c0_i32_0 : i32, i32
  }
  func.func @transform_9(%arg0: i32) -> (i32, i32, i32) {
    %c0_i32 = arith.constant 0 : i32
    %c0_i32_0 = arith.constant 0 : i32
    %c0_i32_1 = arith.constant 0 : i32
    return %arg0, %c0_i32, %c0_i32_0 : i32, i32, i32
  }
  func.func @transform_10(%arg0: i32) -> (i32, i32, i32) {
    %c0_i32 = arith.constant 0 : i32
    %c0_i32_0 = arith.constant 0 : i32
    %c0_i32_1 = arith.constant 0 : i32
    return %arg0, %c0_i32, %c0_i32_0 : i32, i32, i32
  }
}

</mosaic_0001>

<llo_original>
// kernel: tpu_custom_call.1
$region0: #{tpu_custom_call.1}
  #allocation0 [shape = 'u32[]', space=smem, size = 0x4, offset = 0x4, fixed_abs, tag = 'smem constant byte address 0x4 - core index']
  #allocation1 [shape = 'u32[144,128]{1,0:T(1,128)}', space=vmem, size = 0x12000, scoped, tag = 'internal scratch']
  %s0 = inlined_call_operand.hbm [shape: bf16[2,8,16,16], index: 0, kind: input, shape index: {}]
  %s1 = inlined_call_operand.hbm [shape: bf16[2,8,16,16], index: 1, kind: input, shape index: {}]
  %s2 = inlined_call_operand.hbm [shape: bf16[2,8,16,16], index: 2, kind: input, shape index: {}]
  %s3 = inlined_call_operand.hbm [shape: s32[2,16,16], index: 3, kind: input, shape index: {}]
  %s4 = inlined_call_operand.vmem [shape: bf16[16,16], index: 4, kind: input, shape index: {}]
  %s5 = inlined_call_operand.vmem [shape: bf16[16,16], index: 5, kind: input, shape index: {}]
  %s6 = inlined_call_operand.hbm [shape: bf16[16,16], index: 6, kind: input, shape index: {}]
  %s7 = inlined_call_operand.hbm [shape: bf16[8,16,128], index: 7, kind: input, shape index: {}]
  %s8 = inlined_call_operand.vmem [shape: f32[1,128], index: 8, kind: input, shape index: {}]
  %s9 = inlined_call_operand.hbm [shape: f32[2,16,128], index: 9, kind: output, shape index: {0}]
  %s10 = inlined_call_operand.hbm [shape: f32[2,16,128], index: 10, kind: output, shape index: {1}]
  %11 = xla_tuple %s9, %s10
  %s12 = sld [smem:[#allocation0]]
  $region101: #{tpu_custom_call.1} parent=0
    _
  %s14 = ssub.s32 1, %s12
  %s15 = scalar_select 0, %s14, %s12
  $region1: #{tpu_custom_call.1} parent=0
    #allocation2 [shape = 'u8[65536]{0}', space=vmem, size = 0x10000, scoped, tag = 'input window, operand 0']
    #allocation3 [shape = 's32[2]{0}', space=sflag, size = 0x8, scoped, tag = 'scoped memory for tpu_custom_call.1']
    #allocation4 [shape = 's32[2]{0}', space=sflag, size = 0x8, scoped, tag = 'scoped memory for tpu_custom_call.1']
    #allocation5 [shape = 'u8[65536]{0}', space=vmem, size = 0x10000, scoped, tag = 'input window, operand 1']
    #allocation6 [shape = 's32[2]{0}', space=sflag, size = 0x8, scoped, tag = 'scoped memory for tpu_custom_call.1']
    #allocation7 [shape = 'u8[65536]{0}', space=vmem, size = 0x10000, scoped, tag = 'input window, operand 2']
    #allocation8 [shape = 'u8[16384]{0}', space=vmem, size = 0x4000, scoped, tag = 'input window, operand 3']
    #allocation9 [shape = 's32[2]{0}', space=sflag, size = 0x8, scoped, tag = 'scoped memory for tpu_custom_call.1']
    #allocation10 [shape = 'u8[4096]{0}', space=vmem, size = 0x1000, scoped, tag = 'input window, operand 6, single buffered']
    #allocation11 [shape = 'u8[32768]{0}', space=vmem, size = 0x8000, scoped, tag = 'input window, operand 7, single buffered']
    #allocation12 [shape = 's32[1]{0}', space=sflag, size = 0x4, scoped, tag = 'scoped memory for tpu_custom_call.1']
    #allocation13 [shape = 'u8[16384]{0}', space=vmem, size = 0x4000, scoped, tag = 'output window, operand 0']
    #allocation14 [shape = 'u8[16384]{0}', space=vmem, size = 0x4000, scoped, tag = 'output window, operand 1']
    #allocation15 [shape = 's32[2]{0}', space=sflag, size = 0x8, scoped, tag = 'scoped memory for tpu_custom_call.1']
    %16 = vsyncpa [#allocation3], 0
    %s17 = scalar_lea.sflag [#allocation3], 1
    %18 = vsyncpa %s17, 0
    %19 = vsyncpa [#allocation6], 0
    %s20 = scalar_lea.sflag [#allocation6], 1
    %21 = vsyncpa %s20, 0
    %22 = vsyncpa [#allocation9], 0
    %s23 = scalar_lea.sflag [#allocation9], 1
    %24 = vsyncpa %s23, 0
    %25 = vsyncpa [#allocation12], 0
    %26 = vsyncpa [#allocation4], 0
    %s27 = scalar_lea.sflag [#allocation4], 1
    %28 = vsyncpa %s27, 0
    %29 = vsyncpa [#allocation15], 0
    %s30 = scalar_lea.sflag [#allocation15], 1
    %31 = vsyncpa %s30, 0
    loop: start=0, step=1, limit=4
    $region2: #{tpu_custom_call.1} parent=1 // loop_pre_header
      _
    $region3: #{tpu_custom_call.1} parent=1 // loop_header
      %s33 = sphi 0, %s37
      %p34 = scmp.ge.s32.totalorder %s33, 4
      %s43 = sphi 0, %s45
      %s46 = sphi 0, %s43
      %s47 = sphi 0, %s46
      %s63 = sphi 0, %s47
      %s69 = sphi 0, %s71
      %s72 = sphi 0, %s69
      %s73 = sphi 0, %s72
      %s89 = sphi 0, %s73
      %s95 = sphi 0, %s97
      %s98 = sphi 0, %s95
      %s99 = sphi 0, %s98
      %s115 = sphi 0, %s99
      %s121 = sphi 0, %s123
      %s124 = sphi 0, %s121
      %s125 = sphi 0, %s124
      %s141 = sphi 0, %s125
      %s145 = sphi 0, %s145
      %s147 = sphi 0, %s145
      %s148 = sphi 0, %s147
      %s162 = sphi 0, %s148
      %s166 = sphi 0, %s166
      %s168 = sphi 0, %s166
      %s169 = sphi 0, %s168
      %s183 = sphi 0, %s169
      %s187 = sphi 0, %s187
      %s189 = sphi 0, %s187
      %s190 = sphi 0, %s189
      %s204 = sphi 0, %s190
      %s208 = sphi 0, %s208
      %s210 = sphi 0, %s208
      %s211 = sphi 0, %s210
      %s225 = sphi 0, %s211
      %s229 = sphi 0, %s229
      %s231 = sphi 0, %s229
      %s232 = sphi 0, %s231
      %s246 = sphi 0, %s232
      %s252 = sphi 0, %s254
      %s255 = sphi 0, %s252
      %s256 = sphi 0, %s255
      %s272 = sphi 0, %s256
      %s278 = sphi 0, %s280
      %s281 = sphi 0, %s278
      %s282 = sphi 0, %s281
      %s298 = sphi 0, %s282
    $region4: #{tpu_custom_call.1} parent=1 // loop_header_branch
      %36 = sbr.rel (%p34) target = $region8
    $region5: #{tpu_custom_call.1} parent=1 // loop_body
      %s38 = ssub.s32 %s33, 1
      %s39 = ssub.s32 %s33, 2
      %s40 = sadd.s32 %s33, 1
      %s41 = ssub.s32 %s33, %s40
      %p42 = scmp.eq.s32.totalorder %s41, 0
      %s44 = sadd.s32 %s43, 1
      %s45 = scalar_select %p42, %s43, %s44
      %p48 = pneg %p42
      %p49 = scmp.eq.s32.totalorder %s33, 1
      %p50 = por %p48, %p49
      %p51 = scmp.ne.s32.totalorder %s43, %s46
      %p52 = scmp.eq.s32.totalorder %s33, 0
      %p53 = por %p51, %p52
      %p54 = scmp.ne.s32.totalorder %s43, %s46
      %p55 = scmp.eq.s32.totalorder %s38, 1
      %p56 = por %p54, %p55
      %p57 = scmp.ne.s32.totalorder %s46, %s47
      %p58 = scmp.eq.s32.totalorder %s38, 0
      %p59 = por %p57, %p58
      %p60 = scmp.ne.s32.totalorder %s46, %s47
      %p61 = scmp.eq.s32.totalorder %s39, 1
      %p62 = por %p60, %p61
      %p64 = scmp.ne.s32.totalorder %s47, %s63
      %p65 = scmp.eq.s32.totalorder %s39, 0
      %p66 = por %p64, %p65
      %s67 = ssub.s32 %s33, %s40
      %p68 = scmp.eq.s32.totalorder %s67, 0
      %s70 = sadd.s32 %s69, 1
      %s71 = scalar_select %p68, %s69, %s70
      %p74 = pneg %p68
      %p75 = scmp.eq.s32.totalorder %s33, 1
      %p76 = por %p74, %p75
      %p77 = scmp.ne.s32.totalorder %s69, %s72
      %p78 = scmp.eq.s32.totalorder %s33, 0
      %p79 = por %p77, %p78
      %p80 = scmp.ne.s32.totalorder %s69, %s72
      %p81 = scmp.eq.s32.totalorder %s38, 1
      %p82 = por %p80, %p81
      %p83 = scmp.ne.s32.totalorder %s72, %s73
      %p84 = scmp.eq.s32.totalorder %s38, 0
      %p85 = por %p83, %p84
      %p86 = scmp.ne.s32.totalorder %s72, %s73
      %p87 = scmp.eq.s32.totalorder %s39, 1
      %p88 = por %p86, %p87
      %p90 = scmp.ne.s32.totalorder %s73, %s89
      %p91 = scmp.eq.s32.totalorder %s39, 0
      %p92 = por %p90, %p91
      %s93 = ssub.s32 %s33, %s40
      %p94 = scmp.eq.s32.totalorder %s93, 0
      %s96 = sadd.s32 %s95, 1
      %s97 = scalar_select %p94, %s95, %s96
      %p100 = pneg %p94
      %p101 = scmp.eq.s32.totalorder %s33, 1
      %p102 = por %p100, %p101
      %p103 = scmp.ne.s32.totalorder %s95, %s98
      %p104 = scmp.eq.s32.totalorder %s33, 0
      %p105 = por %p103, %p104
      %p106 = scmp.ne.s32.totalorder %s95, %s98
      %p107 = scmp.eq.s32.totalorder %s38, 1
      %p108 = por %p106, %p107
      %p109 = scmp.ne.s32.totalorder %s98, %s99
      %p110 = scmp.eq.s32.totalorder %s38, 0
      %p111 = por %p109, %p110
      %p112 = scmp.ne.s32.totalorder %s98, %s99
      %p113 = scmp.eq.s32.totalorder %s39, 1
      %p114 = por %p112, %p113
      %p116 = scmp.ne.s32.totalorder %s99, %s115
      %p117 = scmp.eq.s32.totalorder %s39, 0
      %p118 = por %p116, %p117
      %s119 = ssub.s32 %s33, %s40
      %p120 = scmp.eq.s32.totalorder %s119, 0
      %s122 = sadd.s32 %s121, 1
      %s123 = scalar_select %p120, %s121, %s122
      %p126 = pneg %p120
      %p127 = scmp.eq.s32.totalorder %s33, 1
      %p128 = por %p126, %p127
      %p129 = scmp.ne.s32.totalorder %s121, %s124
      %p130 = scmp.eq.s32.totalorder %s33, 0
      %p131 = por %p129, %p130
      %p132 = scmp.ne.s32.totalorder %s121, %s124
      %p133 = scmp.eq.s32.totalorder %s38, 1
      %p134 = por %p132, %p133
      %p135 = scmp.ne.s32.totalorder %s124, %s125
      %p136 = scmp.eq.s32.totalorder %s38, 0
      %p137 = por %p135, %p136
      %p138 = scmp.ne.s32.totalorder %s124, %s125
      %p139 = scmp.eq.s32.totalorder %s39, 1
      %p140 = por %p138, %p139
      %p142 = scmp.ne.s32.totalorder %s125, %s141
      %p143 = scmp.eq.s32.totalorder %s39, 0
      %p144 = por %p142, %p143
      %s146 = sadd.s32 %s145, 1
      %p149 = scmp.eq.s32.totalorder %s33, 1
      %p150 = scmp.ne.s32.totalorder %s145, %s147
      %p151 = scmp.eq.s32.totalorder %s33, 0
      %p152 = por %p150, %p151
      %p153 = scmp.ne.s32.totalorder %s145, %s147
      %p154 = scmp.eq.s32.totalorder %s38, 1
      %p155 = por %p153, %p154
      %p156 = scmp.ne.s32.totalorder %s147, %s148
      %p157 = scmp.eq.s32.totalorder %s38, 0
      %p158 = por %p156, %p157
      %p159 = scmp.ne.s32.totalorder %s147, %s148
      %p160 = scmp.eq.s32.totalorder %s39, 1
      %p161 = por %p159, %p160
      %p163 = scmp.ne.s32.totalorder %s148, %s162
      %p164 = scmp.eq.s32.totalorder %s39, 0
      %p165 = por %p163, %p164
      %s167 = sadd.s32 %s166, 1
      %p170 = scmp.eq.s32.totalorder %s33, 1
      %p171 = scmp.ne.s32.totalorder %s166, %s168
      %p172 = scmp.eq.s32.totalorder %s33, 0
      %p173 = por %p171, %p172
      %p174 = scmp.ne.s32.totalorder %s166, %s168
      %p175 = scmp.eq.s32.totalorder %s38, 1
      %p176 = por %p174, %p175
      %p177 = scmp.ne.s32.totalorder %s168, %s169
      %p178 = scmp.eq.s32.totalorder %s38, 0
      %p179 = por %p177, %p178
      %p180 = scmp.ne.s32.totalorder %s168, %s169
      %p181 = scmp.eq.s32.totalorder %s39, 1
      %p182 = por %p180, %p181
      %p184 = scmp.ne.s32.totalorder %s169, %s183
      %p185 = scmp.eq.s32.totalorder %s39, 0
      %p186 = por %p184, %p185
      %s188 = sadd.s32 %s187, 1
      %p191 = scmp.eq.s32.totalorder %s33, 1
      %p192 = scmp.ne.s32.totalorder %s187, %s189
      %p193 = scmp.eq.s32.totalorder %s33, 0
      %p194 = por %p192, %p193
      %p195 = scmp.ne.s32.totalorder %s187, %s189
      %p196 = scmp.eq.s32.totalorder %s38, 1
      %p197 = por %p195, %p196
      %p198 = scmp.ne.s32.totalorder %s189, %s190
      %p199 = scmp.eq.s32.totalorder %s38, 0
      %p200 = por %p198, %p199
      %p201 = scmp.ne.s32.totalorder %s189, %s190
      %p202 = scmp.eq.s32.totalorder %s39, 1
      %p203 = por %p201, %p202
      %p205 = scmp.ne.s32.totalorder %s190, %s204
      %p206 = scmp.eq.s32.totalorder %s39, 0
      %p207 = por %p205, %p206
      %s209 = sadd.s32 %s208, 1
      %p212 = scmp.eq.s32.totalorder %s33, 1
      %p213 = scmp.ne.s32.totalorder %s208, %s210
      %p214 = scmp.eq.s32.totalorder %s33, 0
      %p215 = por %p213, %p214
      %p216 = scmp.ne.s32.totalorder %s208, %s210
      %p217 = scmp.eq.s32.totalorder %s38, 1
      %p218 = por %p216, %p217
      %p219 = scmp.ne.s32.totalorder %s210, %s211
      %p220 = scmp.eq.s32.totalorder %s38, 0
      %p221 = por %p219, %p220
      %p222 = scmp.ne.s32.totalorder %s210, %s211
      %p223 = scmp.eq.s32.totalorder %s39, 1
      %p224 = por %p222, %p223
      %p226 = scmp.ne.s32.totalorder %s211, %s225
      %p227 = scmp.eq.s32.totalorder %s39, 0
      %p228 = por %p226, %p227
      %s230 = sadd.s32 %s229, 1
      %p233 = scmp.eq.s32.totalorder %s33, 1
      %p234 = scmp.ne.s32.totalorder %s229, %s231
      %p235 = scmp.eq.s32.totalorder %s33, 0
      %p236 = por %p234, %p235
      %p237 = scmp.ne.s32.totalorder %s229, %s231
      %p238 = scmp.eq.s32.totalorder %s38, 1
      %p239 = por %p237, %p238
      %p240 = scmp.ne.s32.totalorder %s231, %s232
      %p241 = scmp.eq.s32.totalorder %s38, 0
      %p242 = por %p240, %p241
      %p243 = scmp.ne.s32.totalorder %s231, %s232
      %p244 = scmp.eq.s32.totalorder %s39, 1
      %p245 = por %p243, %p244
      %p247 = scmp.ne.s32.totalorder %s232, %s246
      %p248 = scmp.eq.s32.totalorder %s39, 0
      %p249 = por %p247, %p248
      %s250 = ssub.s32 %s33, %s40
      %p251 = scmp.eq.s32.totalorder %s250, 0
      %s253 = sadd.s32 %s252, 1
      %s254 = scalar_select %p251, %s252, %s253
      %p257 = pneg %p251
      %p258 = scmp.eq.s32.totalorder %s33, 1
      %p259 = por %p257, %p258
      %p260 = scmp.ne.s32.totalorder %s252, %s255
      %p261 = scmp.eq.s32.totalorder %s33, 0
      %p262 = por %p260, %p261
      %p263 = scmp.ne.s32.totalorder %s252, %s255
      %p264 = scmp.eq.s32.totalorder %s38, 1
      %p265 = por %p263, %p264
      %p266 = scmp.ne.s32.totalorder %s255, %s256
      %p267 = scmp.eq.s32.totalorder %s38, 0
      %p268 = por %p266, %p267
      %p269 = scmp.ne.s32.totalorder %s255, %s256
      %p270 = scmp.eq.s32.totalorder %s39, 1
      %p271 = por %p269, %p270
      %p273 = scmp.ne.s32.totalorder %s256, %s272
      %p274 = scmp.eq.s32.totalorder %s39, 0
      %p275 = por %p273, %p274
      %s276 = ssub.s32 %s33, %s40
      %p277 = scmp.eq.s32.totalorder %s276, 0
      %s279 = sadd.s32 %s278, 1
      %s280 = scalar_select %p277, %s278, %s279
      %p283 = pneg %p277
      %p284 = scmp.eq.s32.totalorder %s33, 1
      %p285 = por %p283, %p284
      %p286 = scmp.ne.s32.totalorder %s278, %s281
      %p287 = scmp.eq.s32.totalorder %s33, 0
      %p288 = por %p286, %p287
      %p289 = scmp.ne.s32.totalorder %s278, %s281
      %p290 = scmp.eq.s32.totalorder %s38, 1
      %p291 = por %p289, %p290
      %p292 = scmp.ne.s32.totalorder %s281, %s282
      %p293 = scmp.eq.s32.totalorder %s38, 0
      %p294 = por %p292, %p293
      %p295 = scmp.ne.s32.totalorder %s281, %s282
      %p296 = scmp.eq.s32.totalorder %s39, 1
      %p297 = por %p295, %p296
      %p299 = scmp.ne.s32.totalorder %s282, %s298
      %p300 = scmp.eq.s32.totalorder %s39, 0
      %p301 = por %p299, %p300
      %p302 = scmp.le.s32.totalorder 1, %s33
      %p303 = scmp.lt.s32.totalorder %s33, 3
      %p304 = pnand %p302, %p303
      %p305 = pneg %p304
      // Predicated region
      $region9: #{tpu_custom_call.1} parent=5 // pred_check
        _
      $region10: #{tpu_custom_call.1} parent=5 // pred_check_branch
        %307 = sbr.rel (%p304) target = $region12
      $region11: #{tpu_custom_call.1} parent=5 // pred_region
        %s308 = ssub.s32 %s33, 1
        // Predicated region
        $region13: #{tpu_custom_call.1} parent=11 // pred_check
          %p309 = pneg %p158
        $region14: #{tpu_custom_call.1} parent=11 // pred_check_branch
          %311 = sbr.rel (%p309) target = $region16
        $region15: #{tpu_custom_call.1} parent=11 // pred_region
          _
        $region16: #{tpu_custom_call.1} parent=11 // pred_fallthru
          _
        // Predicated region
        $region17: #{tpu_custom_call.1} parent=11 // pred_check
          %p312 = pneg %p179
        $region18: #{tpu_custom_call.1} parent=11 // pred_check_branch
          %314 = sbr.rel (%p312) target = $region20
        $region19: #{tpu_custom_call.1} parent=11 // pred_region
          _
        $region20: #{tpu_custom_call.1} parent=11 // pred_fallthru
          _
        // Predicated region
        $region21: #{tpu_custom_call.1} parent=11 // pred_check
          %p315 = pneg %p200
        $region22: #{tpu_custom_call.1} parent=11 // pred_check_branch
          %317 = sbr.rel (%p315) target = $region24
        $region23: #{tpu_custom_call.1} parent=11 // pred_region
          %s319 = ssub.s32 128, 128
          %320 = vsyncadd [#allocation9], %s319
          %s321 = sshll.u32 [#allocation10], 4
          %s322 = int_to_ptr.vmem [resolvable:$true] %s321
          %327 = dma.hbm_to_vmem [thread:$0]  %s6, 128, %s322, [#allocation9], 64, 64, 4
        $region24: #{tpu_custom_call.1} parent=11 // pred_fallthru
          _
        // Predicated region
        $region25: #{tpu_custom_call.1} parent=11 // pred_check
          %p328 = pneg %p221
        $region26: #{tpu_custom_call.1} parent=11 // pred_check_branch
          %330 = sbr.rel (%p328) target = $region28
        $region27: #{tpu_custom_call.1} parent=11 // pred_region
          %s332 = ssub.s32 1024, 1024
          %333 = vsyncadd [#allocation12], %s332
          %s334 = sshll.u32 [#allocation11], 4
          %s335 = int_to_ptr.vmem [resolvable:$true] %s334
          %340 = dma.hbm_to_vmem [thread:$0]  %s7, 1024, %s335, [#allocation12], 64, 64, 4
        $region28: #{tpu_custom_call.1} parent=11 // pred_fallthru
          _
        // Predicated region
        $region29: #{tpu_custom_call.1} parent=11 // pred_check
          %p341 = pneg %p242
        $region30: #{tpu_custom_call.1} parent=11 // pred_check_branch
          %343 = sbr.rel (%p341) target = $region32
        $region31: #{tpu_custom_call.1} parent=11 // pred_region
          _
        $region32: #{tpu_custom_call.1} parent=11 // pred_fallthru
          _
      $region12: #{tpu_custom_call.1} parent=5 // pred_fallthru
        _
      %p344 = scmp.lt.s32.totalorder %s33, 2
      // Predicated region
      $region33: #{tpu_custom_call.1} parent=5 // pred_check
        %p345 = pneg %p344
      $region34: #{tpu_custom_call.1} parent=5 // pred_check_branch
        %347 = sbr.rel (%p345) target = $region36
      $region35: #{tpu_custom_call.1} parent=5 // pred_region
        // Predicated region
        $region37: #{tpu_custom_call.1} parent=35 // pred_check
          %p348 = pneg %p53
        $region38: #{tpu_custom_call.1} parent=35 // pred_check_branch
          %350 = sbr.rel (%p348) target = $region40
        $region39: #{tpu_custom_call.1} parent=35 // pred_region
          %s351 = sand.u32 %s43, 1
          %s352 = scalar_lea.sflag [#allocation3], %s351
          %s353 = sand.u32 %s43, 1
          %s354 = smul.addr %s353, 64
          %s355 = scalar_lea.vmem [#allocation2], %s354
          %s357 = ssub.s32 1024, 1024
          %358 = vsyncadd %s352, %s357
          %s359 = smul.addr %s33, 16
          %s360 = smul.addr %s359, 64
          %s361 = scalar_lea.hbm %s0, %s360
          %s362 = sshll.u32 %s355, 4
          %s363 = int_to_ptr.vmem [resolvable:$true] %s362
          %368 = dma.hbm_to_vmem [thread:$0]  %s361, 1024, %s363, %s352, 64, 64, 4
        $region40: #{tpu_custom_call.1} parent=35 // pred_fallthru
          _
        // Predicated region
        $region41: #{tpu_custom_call.1} parent=35 // pred_check
          %p369 = pneg %p79
        $region42: #{tpu_custom_call.1} parent=35 // pred_check_branch
          %371 = sbr.rel (%p369) target = $region44
        $region43: #{tpu_custom_call.1} parent=35 // pred_region
          %s372 = sand.u32 %s33, 1
          %s373 = scalar_lea.sflag [#allocation6], %s372
          %s374 = sand.u32 %s69, 1
          %s375 = smul.addr %s374, 64
          %s376 = scalar_lea.vmem [#allocation5], %s375
          %s378 = ssub.s32 1024, 1024
          %379 = vsyncadd %s373, %s378
          %s380 = smul.addr %s33, 16
          %s381 = smul.addr %s380, 64
          %s382 = scalar_lea.hbm %s1, %s381
          %s383 = sshll.u32 %s376, 4
          %s384 = int_to_ptr.vmem [resolvable:$true] %s383
          %389 = dma.hbm_to_vmem [thread:$0]  %s382, 1024, %s384, %s373, 64, 64, 4
        $region44: #{tpu_custom_call.1} parent=35 // pred_fallthru
          _
        // Predicated region
        $region45: #{tpu_custom_call.1} parent=35 // pred_check
          %p390 = pneg %p105
        $region46: #{tpu_custom_call.1} parent=35 // pred_check_branch
          %392 = sbr.rel (%p390) target = $region48
        $region47: #{tpu_custom_call.1} parent=35 // pred_region
          %s393 = sand.u32 %s33, 1
          %s394 = scalar_lea.sflag [#allocation6], %s393
          %s395 = sand.u32 %s95, 1
          %s396 = smul.addr %s395, 64
          %s397 = scalar_lea.vmem [#allocation7], %s396
          %s399 = ssub.s32 1024, 1024
          %400 = vsyncadd %s394, %s399
          %s401 = smul.addr %s33, 16
          %s402 = smul.addr %s401, 64
          %s403 = scalar_lea.hbm %s2, %s402
          %s404 = sshll.u32 %s397, 4
          %s405 = int_to_ptr.vmem [resolvable:$true] %s404
          %410 = dma.hbm_to_vmem [thread:$0]  %s403, 1024, %s405, %s394, 64, 64, 4
        $region48: #{tpu_custom_call.1} parent=35 // pred_fallthru
          _
        // Predicated region
        $region49: #{tpu_custom_call.1} parent=35 // pred_check
          %p411 = pneg %p131
        $region50: #{tpu_custom_call.1} parent=35 // pred_check_branch
          %413 = sbr.rel (%p411) target = $region52
        $region51: #{tpu_custom_call.1} parent=35 // pred_region
          %s414 = sand.u32 %s33, 1
          %s415 = scalar_lea.sflag [#allocation9], %s414
          %s416 = sand.u32 %s121, 1
          %s417 = smul.addr %s416, 16
          %s418 = scalar_lea.vmem [#allocation8], %s417
          %s420 = ssub.s32 256, 256
          %421 = vsyncadd %s415, %s420
          %s422 = smul.addr %s33, 2
          %s423 = smul.addr %s422, 128
          %s424 = scalar_lea.hbm %s3, %s423
          %s425 = sshll.u32 %s418, 4
          %s426 = int_to_ptr.vmem [resolvable:$true] %s425
          %431 = dma.hbm_to_vmem [thread:$0]  %s424, 256, %s426, %s415, 128, 128, 8
        $region52: #{tpu_custom_call.1} parent=35 // pred_fallthru
          _
      $region36: #{tpu_custom_call.1} parent=5 // pred_fallthru
        _
      %p432 = scmp.le.s32.totalorder 1, %s33
      %p433 = scmp.lt.s32.totalorder %s33, 3
      %p434 = pnand %p432, %p433
      %p435 = pneg %p434
      // Predicated region
      $region53: #{tpu_custom_call.1} parent=5 // pred_check
        _
      $region54: #{tpu_custom_call.1} parent=5 // pred_check_branch
        %437 = sbr.rel (%p434) target = $region56
      $region55: #{tpu_custom_call.1} parent=5 // pred_region
        %s438 = ssub.s32 %s33, 1
        %s439 = sand.u32 %s46, 1
        %s440 = scalar_lea.sflag [#allocation3], %s439
        %s441 = sand.u32 %s46, 1
        %s442 = smul.addr %s441, 64
        %s443 = scalar_lea.vmem [#allocation2], %s442
        // Predicated region
        $region57: #{tpu_custom_call.1} parent=55 // pred_check
          %p444 = pneg %p59
        $region58: #{tpu_custom_call.1} parent=55 // pred_check_branch
          %446 = sbr.rel (%p444) target = $region60
        $region59: #{tpu_custom_call.1} parent=55 // pred_region
          %447 = dma.done %s440, 1024
        $region60: #{tpu_custom_call.1} parent=55 // pred_fallthru
          _
        %s448 = sand.u32 %s38, 1
        %s449 = scalar_lea.sflag [#allocation6], %s448
        %s450 = sand.u32 %s72, 1
        %s451 = smul.addr %s450, 64
        %s452 = scalar_lea.vmem [#allocation5], %s451
        // Predicated region
        $region61: #{tpu_custom_call.1} parent=55 // pred_check
          %p453 = pneg %p85
        $region62: #{tpu_custom_call.1} parent=55 // pred_check_branch
          %455 = sbr.rel (%p453) target = $region64
        $region63: #{tpu_custom_call.1} parent=55 // pred_region
          %456 = dma.done %s449, 1024
        $region64: #{tpu_custom_call.1} parent=55 // pred_fallthru
          _
        %s457 = sand.u32 %s38, 1
        %s458 = scalar_lea.sflag [#allocation6], %s457
        %s459 = sand.u32 %s98, 1
        %s460 = smul.addr %s459, 64
        %s461 = scalar_lea.vmem [#allocation7], %s460
        // Predicated region
        $region65: #{tpu_custom_call.1} parent=55 // pred_check
          %p462 = pneg %p111
        $region66: #{tpu_custom_call.1} parent=55 // pred_check_branch
          %464 = sbr.rel (%p462) target = $region68
        $region67: #{tpu_custom_call.1} parent=55 // pred_region
          %465 = dma.done %s458, 1024
        $region68: #{tpu_custom_call.1} parent=55 // pred_fallthru
          _
        %s466 = sand.u32 %s38, 1
        %s467 = scalar_lea.sflag [#allocation9], %s466
        %s468 = sand.u32 %s124, 1
        %s469 = smul.addr %s468, 16
        %s470 = scalar_lea.vmem [#allocation8], %s469
        // Predicated region
        $region69: #{tpu_custom_call.1} parent=55 // pred_check
          %p471 = pneg %p137
        $region70: #{tpu_custom_call.1} parent=55 // pred_check_branch
          %473 = sbr.rel (%p471) target = $region72
        $region71: #{tpu_custom_call.1} parent=55 // pred_region
          %474 = dma.done %s467, 256
        $region72: #{tpu_custom_call.1} parent=55 // pred_fallthru
          _
        // Predicated region
        $region73: #{tpu_custom_call.1} parent=55 // pred_check
          %p475 = pneg %p200
        $region74: #{tpu_custom_call.1} parent=55 // pred_check_branch
          %477 = sbr.rel (%p475) target = $region76
        $region75: #{tpu_custom_call.1} parent=55 // pred_region
          %478 = dma.done [#allocation9], 128
        $region76: #{tpu_custom_call.1} parent=55 // pred_fallthru
          _
        // Predicated region
        $region77: #{tpu_custom_call.1} parent=55 // pred_check
          %p479 = pneg %p221
        $region78: #{tpu_custom_call.1} parent=55 // pred_check_branch
          %481 = sbr.rel (%p479) target = $region80
        $region79: #{tpu_custom_call.1} parent=55 // pred_region
          %482 = dma.done [#allocation12], 1024
        $region80: #{tpu_custom_call.1} parent=55 // pred_fallthru
          _
        %s483 = sand.u32 %s46, 1
        %s484 = scalar_lea.sflag [#allocation3], %s483
        %s485 = sand.u32 %s46, 1
        %s486 = smul.addr %s485, 64
        %s487 = scalar_lea.vmem [#allocation2], %s486
        %p488 = pneg %p59
        %p489 = pneg %p56
        %s490 = sand.u32 %s38, 1
        %s491 = scalar_lea.sflag [#allocation6], %s490
        %s492 = sand.u32 %s72, 1
        %s493 = smul.addr %s492, 64
        %s494 = scalar_lea.vmem [#allocation5], %s493
        %p495 = pneg %p85
        %p496 = pneg %p82
        %s497 = sand.u32 %s38, 1
        %s498 = scalar_lea.sflag [#allocation6], %s497
        %s499 = sand.u32 %s98, 1
        %s500 = smul.addr %s499, 64
        %s501 = scalar_lea.vmem [#allocation7], %s500
        %p502 = pneg %p111
        %p503 = pneg %p108
        %s504 = sand.u32 %s38, 1
        %s505 = scalar_lea.sflag [#allocation9], %s504
        %s506 = sand.u32 %s124, 1
        %s507 = smul.addr %s506, 16
        %s508 = scalar_lea.vmem [#allocation8], %s507
        %p509 = pneg %p137
        %p510 = pneg %p134
        %p511 = pneg %p158
        %p512 = pneg %p155
        %p513 = pneg %p179
        %p514 = pneg %p176
        %p515 = pneg %p200
        %p516 = pneg %p197
        %p517 = pneg %p221
        %p518 = pneg %p218
        %p519 = pneg %p242
        %p520 = pneg %p239
        %p521 = pneg %p268
        %p522 = pneg %p265
        %s523 = sand.u32 %s255, 1
        %s524 = scalar_lea.sflag [#allocation4], %s523
        %s525 = sand.u32 %s255, 1
        %s526 = smul.addr %s525, 16
        %s527 = scalar_lea.vmem [#allocation13], %s526
        %p528 = pneg %p294
        %p529 = pneg %p291
        %s530 = sand.u32 %s281, 1
        %s531 = scalar_lea.sflag [#allocation15], %s530
        %s532 = sand.u32 %s281, 1
        %s533 = smul.addr %s532, 16
        %s534 = scalar_lea.vmem [#allocation14], %s533
        %v536 = vld [vmem:[%s443] sm:$0xf]
        %v537 = vld [vmem:[%s443 + $0x4] sm:$0xf]
        %v538 = vld [vmem:[%s443 + $0x8] sm:$0xf]
        %v539 = vld [vmem:[%s443 + $0xc] sm:$0xf]
        %v540 = vld [vmem:[%s443 + $0x10] sm:$0xf]
        %v541 = vld [vmem:[%s443 + $0x14] sm:$0xf]
        %v542 = vld [vmem:[%s443 + $0x18] sm:$0xf]
        %v543 = vld [vmem:[%s443 + $0x1c] sm:$0xf]
        %v544 = vld [vmem:[%s443 + $0x20] sm:$0xf]
        %v545 = vld [vmem:[%s443 + $0x24] sm:$0xf]
        %v546 = vld [vmem:[%s443 + $0x28] sm:$0xf]
        %v547 = vld [vmem:[%s443 + $0x2c] sm:$0xf]
        %v548 = vld [vmem:[%s443 + $0x30] sm:$0xf]
        %v549 = vld [vmem:[%s443 + $0x34] sm:$0xf]
        %v550 = vld [vmem:[%s443 + $0x38] sm:$0xf]
        %v551 = vld [vmem:[%s443 + $0x3c] sm:$0xf]
        %v552 = vld [vmem:[%s4] sm:$0xf]
        %v553 = vld [vmem:[%s4 + $0x4] sm:$0xf]
        %v570 = vunpack.c.l.b16 %v536
        %v571 = vunpack.c.l.b16 %v537
        %v572 = vunpack.c.l.b16 %v538
        %v573 = vunpack.c.l.b16 %v539
        %v574 = vunpack.c.l.b16 %v540
        %v575 = vunpack.c.l.b16 %v541
        %v576 = vunpack.c.l.b16 %v542
        %v577 = vunpack.c.l.b16 %v543
        %v578 = vunpack.c.l.b16 %v544
        %v579 = vunpack.c.l.b16 %v545
        %v580 = vunpack.c.l.b16 %v546
        %v581 = vunpack.c.l.b16 %v547
        %v582 = vunpack.c.l.b16 %v548
        %v583 = vunpack.c.l.b16 %v549
        %v584 = vunpack.c.l.b16 %v550
        %v585 = vunpack.c.l.b16 %v551
        %v586 = vpack.c.b16 %v571, %v570
        %v587 = vpack.c.b16 %v573, %v572
        %v588 = vpack.c.b16 %v575, %v574
        %v589 = vpack.c.b16 %v577, %v576
        %v590 = vpack.c.b16 %v579, %v578
        %v591 = vpack.c.b16 %v581, %v580
        %v592 = vpack.c.b16 %v583, %v582
        %v593 = vpack.c.b16 %v585, %v584
        %v596 = vunpack.c.l.b16 %v552
        %v597 = vunpack.c.l.b16 %v553
        %v598 = vpack.c.b16 %v597, %v596
        %vm600 = vcmask 130048
        %v602 = vsel %vm600, %v586, 0
        %v605 = vsel %vm600, %v587, 0
        %v608 = vsel %vm600, %v588, 0
        %v611 = vsel %vm600, %v589, 0
        %v614 = vsel %vm600, %v590, 0
        %v617 = vsel %vm600, %v591, 0
        %v620 = vsel %vm600, %v592, 0
        %v623 = vsel %vm600, %v593, 0
        %625 = vmatprep.subr.bf16.mxu0 0
        %626 = vmatpush1.bf16.msra.mxu0 %v598
        %627 = vmatprep.subr.bf16.mxu0 0
        %628 = vmatpush1.bf16.msra.mxu0 0
        %629 = vmatprep.subr.bf16.mxu0 0
        %630 = vmatpush1.bf16.msra.mxu0 0
        %631 = vmatprep.subr.bf16.mxu0 0
        %632 = vmatpush1.bf16.msra.mxu0 0
        %633 = vmatprep.subr.bf16.mxu0 0
        %634 = vmatpush1.bf16.msra.mxu0 0
        %635 = vmatprep.subr.bf16.mxu0 0
        %636 = vmatpush1.bf16.msra.mxu0 0
        %637 = vmatprep.subr.bf16.mxu0 0
        %638 = vmatpush1.bf16.msra.mxu0 0
        %639 = vmatprep.subr.bf16.mxu0 0
        %640 = vmatpush1.bf16.msra.mxu0 0
        %641 = vmatprep.subr.bf16.mxu0 0
        %642 = vmatpush1.bf16.msra.mxu0 0
        %643 = vmatprep.subr.bf16.mxu0 0
        %644 = vmatpush1.bf16.msra.mxu0 0
        %645 = vmatprep.subr.bf16.mxu0 0
        %646 = vmatpush1.bf16.msra.mxu0 0
        %647 = vmatprep.subr.bf16.mxu0 0
        %648 = vmatpush1.bf16.msra.mxu0 0
        %649 = vmatprep.subr.bf16.mxu0 0
        %650 = vmatpush1.bf16.msra.mxu0 0
        %651 = vmatprep.subr.bf16.mxu0 0
        %652 = vmatpush1.bf16.msra.mxu0 0
        %653 = vmatprep.subr.bf16.mxu0 0
        %654 = vmatpush1.bf16.msra.mxu0 0
        %655 = vmatprep.subr.bf16.mxu0 0
        %656 = vmatpush1.bf16.msra.mxu0 0
        %657 = vmatprep.mubr.bf16.mxu0 0
        %658 = vmatmul.mubr.bf16.gmra.mrb[0].mxu0 %v602
        %v659 = vpop.f32.mrb[0].mxu0
        %v660 = vadd.f32 0.0, %v659
        %v661 = vpop.f32.mrb[0].mxu0
        %v662 = vpop.f32.mrb[0].mxu0
        %v663 = vadd.f32 0.0, %v662
        %v664 = vpop.f32.mrb[0].mxu0
        %665 = vmatprep.mubr.bf16.mxu0 0
        %666 = vmatmul.mubr.bf16.gmra.mrb[0].mxu0 %v605
        %v667 = vpop.f32.mrb[0].mxu0
        %v668 = vadd.f32 0.0, %v667
        %v669 = vpop.f32.mrb[0].mxu0
        %v670 = vpop.f32.mrb[0].mxu0
        %v671 = vadd.f32 0.0, %v670
        %v672 = vpop.f32.mrb[0].mxu0
        %673 = vmatprep.mubr.bf16.mxu0 0
        %674 = vmatmul.mubr.bf16.gmra.mrb[0].mxu0 %v608
        %v675 = vpop.f32.mrb[0].mxu0
        %v676 = vadd.f32 0.0, %v675
        %v677 = vpop.f32.mrb[0].mxu0
        %v678 = vpop.f32.mrb[0].mxu0
        %v679 = vadd.f32 0.0, %v678
        %v680 = vpop.f32.mrb[0].mxu0
        %681 = vmatprep.mubr.bf16.mxu0 0
        %682 = vmatmul.mubr.bf16.gmra.mrb[0].mxu0 %v611
        %v683 = vpop.f32.mrb[0].mxu0
        %v684 = vadd.f32 0.0, %v683
        %v685 = vpop.f32.mrb[0].mxu0
        %v686 = vpop.f32.mrb[0].mxu0
        %v687 = vadd.f32 0.0, %v686
        %v688 = vpop.f32.mrb[0].mxu0
        %689 = vmatprep.mubr.bf16.mxu0 0
        %690 = vmatmul.mubr.bf16.gmra.mrb[0].mxu0 %v614
        %v691 = vpop.f32.mrb[0].mxu0
        %v692 = vadd.f32 0.0, %v691
        %v693 = vpop.f32.mrb[0].mxu0
        %v694 = vpop.f32.mrb[0].mxu0
        %v695 = vadd.f32 0.0, %v694
        %v696 = vpop.f32.mrb[0].mxu0
        %697 = vmatprep.mubr.bf16.mxu0 0
        %698 = vmatmul.mubr.bf16.gmra.mrb[0].mxu0 %v617
        %v699 = vpop.f32.mrb[0].mxu0
        %v700 = vadd.f32 0.0, %v699
        %v701 = vpop.f32.mrb[0].mxu0
        %v702 = vpop.f32.mrb[0].mxu0
        %v703 = vadd.f32 0.0, %v702
        %v704 = vpop.f32.mrb[0].mxu0
        %705 = vmatprep.mubr.bf16.mxu0 0
        %706 = vmatmul.mubr.bf16.gmra.mrb[0].mxu0 %v620
        %v707 = vpop.f32.mrb[0].mxu0
        %v708 = vadd.f32 0.0, %v707
        %v709 = vpop.f32.mrb[0].mxu0
        %v710 = vpop.f32.mrb[0].mxu0
        %v711 = vadd.f32 0.0, %v710
        %v712 = vpop.f32.mrb[0].mxu0
        %713 = vmatprep.mubr.bf16.mxu0 0
        %714 = vmatmul.mubr.bf16.gmra.mrb[0].mxu0 %v623
        %v715 = vpop.f32.mrb[0].mxu0
        %v716 = vadd.f32 0.0, %v715
        %v717 = vpop.f32.mrb[0].mxu0
        %v718 = vpop.f32.mrb[0].mxu0
        %v719 = vadd.f32 0.0, %v718
        %v720 = vpop.f32.mrb[0].mxu0
        %721 = vdwg.mxu0
        %v722 = vld [vmem:[%s452] sm:$0xf]
        %v723 = vld [vmem:[%s452 + $0x4] sm:$0xf]
        %v724 = vld [vmem:[%s452 + $0x8] sm:$0xf]
        %v725 = vld [vmem:[%s452 + $0xc] sm:$0xf]
        %v726 = vld [vmem:[%s452 + $0x10] sm:$0xf]
        %v727 = vld [vmem:[%s452 + $0x14] sm:$0xf]
        %v728 = vld [vmem:[%s452 + $0x18] sm:$0xf]
        %v729 = vld [vmem:[%s452 + $0x1c] sm:$0xf]
        %v730 = vld [vmem:[%s452 + $0x20] sm:$0xf]
        %v731 = vld [vmem:[%s452 + $0x24] sm:$0xf]
        %v732 = vld [vmem:[%s452 + $0x28] sm:$0xf]
        %v733 = vld [vmem:[%s452 + $0x2c] sm:$0xf]
        %v734 = vld [vmem:[%s452 + $0x30] sm:$0xf]
        %v735 = vld [vmem:[%s452 + $0x34] sm:$0xf]
        %v736 = vld [vmem:[%s452 + $0x38] sm:$0xf]
        %v737 = vld [vmem:[%s452 + $0x3c] sm:$0xf]
        %v738 = vld [vmem:[%s5] sm:$0xf]
        %v739 = vld [vmem:[%s5 + $0x4] sm:$0xf]
        %v756 = vunpack.c.l.b16 %v722
        %v757 = vunpack.c.l.b16 %v723
        %v758 = vunpack.c.l.b16 %v724
        %v759 = vunpack.c.l.b16 %v725
        %v760 = vunpack.c.l.b16 %v726
        %v761 = vunpack.c.l.b16 %v727
        %v762 = vunpack.c.l.b16 %v728
        %v763 = vunpack.c.l.b16 %v729
        %v764 = vunpack.c.l.b16 %v730
        %v765 = vunpack.c.l.b16 %v731
        %v766 = vunpack.c.l.b16 %v732
        %v767 = vunpack.c.l.b16 %v733
        %v768 = vunpack.c.l.b16 %v734
        %v769 = vunpack.c.l.b16 %v735
        %v770 = vunpack.c.l.b16 %v736
        %v771 = vunpack.c.l.b16 %v737
        %v772 = vpack.c.b16 %v757, %v756
        %v773 = vpack.c.b16 %v759, %v758
        %v774 = vpack.c.b16 %v761, %v760
        %v775 = vpack.c.b16 %v763, %v762
        %v776 = vpack.c.b16 %v765, %v764
        %v777 = vpack.c.b16 %v767, %v766
        %v778 = vpack.c.b16 %v769, %v768
        %v779 = vpack.c.b16 %v771, %v770
        %v782 = vunpack.c.l.b16 %v738
        %v783 = vunpack.c.l.b16 %v739
        %v784 = vpack.c.b16 %v783, %v782
        %v787 = vsel %vm600, %v772, 0
        %v790 = vsel %vm600, %v773, 0
        %v793 = vsel %vm600, %v774, 0
        %v796 = vsel %vm600, %v775, 0
        %v799 = vsel %vm600, %v776, 0
        %v802 = vsel %vm600, %v777, 0
        %v805 = vsel %vm600, %v778, 0
        %v808 = vsel %vm600, %v779, 0
        %810 = vmatprep.subr.bf16.mxu0 0
        %811 = vmatpush1.bf16.msra.mxu0 %v784
        %812 = vmatprep.subr.bf16.mxu0 0
        %813 = vmatpush1.bf16.msra.mxu0 0
        %814 = vmatprep.subr.bf16.mxu0 0
        %815 = vmatpush1.bf16.msra.mxu0 0
        %816 = vmatprep.subr.bf16.mxu0 0
        %817 = vmatpush1.bf16.msra.mxu0 0
        %818 = vmatprep.subr.bf16.mxu0 0
        %819 = vmatpush1.bf16.msra.mxu0 0
        %820 = vmatprep.subr.bf16.mxu0 0
        %821 = vmatpush1.bf16.msra.mxu0 0
        %822 = vmatprep.subr.bf16.mxu0 0
        %823 = vmatpush1.bf16.msra.mxu0 0
        %824 = vmatprep.subr.bf16.mxu0 0
        %825 = vmatpush1.bf16.msra.mxu0 0
        %826 = vmatprep.subr.bf16.mxu0 0
        %827 = vmatpush1.bf16.msra.mxu0 0
        %828 = vmatprep.subr.bf16.mxu0 0
        %829 = vmatpush1.bf16.msra.mxu0 0
        %830 = vmatprep.subr.bf16.mxu0 0
        %831 = vmatpush1.bf16.msra.mxu0 0
        %832 = vmatprep.subr.bf16.mxu0 0
        %833 = vmatpush1.bf16.msra.mxu0 0
        %834 = vmatprep.subr.bf16.mxu0 0
        %835 = vmatpush1.bf16.msra.mxu0 0
        %836 = vmatprep.subr.bf16.mxu0 0
        %837 = vmatpush1.bf16.msra.mxu0 0
        %838 = vmatprep.subr.bf16.mxu0 0
        %839 = vmatpush1.bf16.msra.mxu0 0
        %840 = vmatprep.subr.bf16.mxu0 0
        %841 = vmatpush1.bf16.msra.mxu0 0
        %842 = vmatprep.mubr.bf16.mxu0 0
        %843 = vmatmul.mubr.bf16.gmra.mrb[0].mxu0 %v787
        %v844 = vpop.f32.mrb[0].mxu0
        %v845 = vadd.f32 0.0, %v844
        %v846 = vpop.f32.mrb[0].mxu0
        %v847 = vpop.f32.mrb[0].mxu0
        %v848 = vadd.f32 0.0, %v847
        %v849 = vpop.f32.mrb[0].mxu0
        %850 = vmatprep.mubr.bf16.mxu0 0
        %851 = vmatmul.mubr.bf16.gmra.mrb[0].mxu0 %v790
        %v852 = vpop.f32.mrb[0].mxu0
        %v853 = vadd.f32 0.0, %v852
        %v854 = vpop.f32.mrb[0].mxu0
        %v855 = vpop.f32.mrb[0].mxu0
        %v856 = vadd.f32 0.0, %v855
        %v857 = vpop.f32.mrb[0].mxu0
        %858 = vmatprep.mubr.bf16.mxu0 0
        %859 = vmatmul.mubr.bf16.gmra.mrb[0].mxu0 %v793
        %v860 = vpop.f32.mrb[0].mxu0
        %v861 = vadd.f32 0.0, %v860
        %v862 = vpop.f32.mrb[0].mxu0
        %v863 = vpop.f32.mrb[0].mxu0
        %v864 = vadd.f32 0.0, %v863
        %v865 = vpop.f32.mrb[0].mxu0
        %866 = vmatprep.mubr.bf16.mxu0 0
        %867 = vmatmul.mubr.bf16.gmra.mrb[0].mxu0 %v796
        %v868 = vpop.f32.mrb[0].mxu0
        %v869 = vadd.f32 0.0, %v868
        %v870 = vpop.f32.mrb[0].mxu0
        %v871 = vpop.f32.mrb[0].mxu0
        %v872 = vadd.f32 0.0, %v871
        %v873 = vpop.f32.mrb[0].mxu0
        %874 = vmatprep.mubr.bf16.mxu0 0
        %875 = vmatmul.mubr.bf16.gmra.mrb[0].mxu0 %v799
        %v876 = vpop.f32.mrb[0].mxu0
        %v877 = vadd.f32 0.0, %v876
        %v878 = vpop.f32.mrb[0].mxu0
        %v879 = vpop.f32.mrb[0].mxu0
        %v880 = vadd.f32 0.0, %v879
        %v881 = vpop.f32.mrb[0].mxu0
        %882 = vmatprep.mubr.bf16.mxu0 0
        %883 = vmatmul.mubr.bf16.gmra.mrb[0].mxu0 %v802
        %v884 = vpop.f32.mrb[0].mxu0
        %v885 = vadd.f32 0.0, %v884
        %v886 = vpop.f32.mrb[0].mxu0
        %v887 = vpop.f32.mrb[0].mxu0
        %v888 = vadd.f32 0.0, %v887
        %v889 = vpop.f32.mrb[0].mxu0
        %890 = vmatprep.mubr.bf16.mxu0 0
        %891 = vmatmul.mubr.bf16.gmra.mrb[0].mxu0 %v805
        %v892 = vpop.f32.mrb[0].mxu0
        %v893 = vadd.f32 0.0, %v892
        %v894 = vpop.f32.mrb[0].mxu0
        %v895 = vpop.f32.mrb[0].mxu0
        %v896 = vadd.f32 0.0, %v895
        %v897 = vpop.f32.mrb[0].mxu0
        %898 = vmatprep.mubr.bf16.mxu0 0
        %899 = vmatmul.mubr.bf16.gmra.mrb[0].mxu0 %v808
        %v900 = vpop.f32.mrb[0].mxu0
        %v901 = vadd.f32 0.0, %v900
        %v902 = vpop.f32.mrb[0].mxu0
        %v903 = vpop.f32.mrb[0].mxu0
        %v904 = vadd.f32 0.0, %v903
        %v905 = vpop.f32.mrb[0].mxu0
        %906 = vdwg.mxu0
        %v907 = vld [vmem:[%s461] sm:$0xf]
        %v908 = vld [vmem:[%s461 + $0x4] sm:$0xf]
        %v909 = vld [vmem:[%s461 + $0x8] sm:$0xf]
        %v910 = vld [vmem:[%s461 + $0xc] sm:$0xf]
        %v911 = vld [vmem:[%s461 + $0x10] sm:$0xf]
        %v912 = vld [vmem:[%s461 + $0x14] sm:$0xf]
        %v913 = vld [vmem:[%s461 + $0x18] sm:$0xf]
        %v914 = vld [vmem:[%s461 + $0x1c] sm:$0xf]
        %v915 = vld [vmem:[%s461 + $0x20] sm:$0xf]
        %v916 = vld [vmem:[%s461 + $0x24] sm:$0xf]
        %v917 = vld [vmem:[%s461 + $0x28] sm:$0xf]
        %v918 = vld [vmem:[%s461 + $0x2c] sm:$0xf]
        %v919 = vld [vmem:[%s461 + $0x30] sm:$0xf]
        %v920 = vld [vmem:[%s461 + $0x34] sm:$0xf]
        %v921 = vld [vmem:[%s461 + $0x38] sm:$0xf]
        %v922 = vld [vmem:[%s461 + $0x3c] sm:$0xf]
        %v923 = vld [vmem:[#allocation10] sm:$0xf]
        %v924 = vld [vmem:[#allocation10 + $0x4] sm:$0xf]
        %v941 = vunpack.c.l.b16 %v907
        %v942 = vunpack.c.l.b16 %v908
        %v943 = vunpack.c.l.b16 %v909
        %v944 = vunpack.c.l.b16 %v910
        %v945 = vunpack.c.l.b16 %v911
        %v946 = vunpack.c.l.b16 %v912
        %v947 = vunpack.c.l.b16 %v913
        %v948 = vunpack.c.l.b16 %v914
        %v949 = vunpack.c.l.b16 %v915
        %v950 = vunpack.c.l.b16 %v916
        %v951 = vunpack.c.l.b16 %v917
        %v952 = vunpack.c.l.b16 %v918
        %v953 = vunpack.c.l.b16 %v919
        %v954 = vunpack.c.l.b16 %v920
        %v955 = vunpack.c.l.b16 %v921
        %v956 = vunpack.c.l.b16 %v922
        %v957 = vpack.c.b16 %v942, %v941
        %v958 = vpack.c.b16 %v944, %v943
        %v959 = vpack.c.b16 %v946, %v945
        %v960 = vpack.c.b16 %v948, %v947
        %v961 = vpack.c.b16 %v950, %v949
        %v962 = vpack.c.b16 %v952, %v951
        %v963 = vpack.c.b16 %v954, %v953
        %v964 = vpack.c.b16 %v956, %v955
        %v967 = vunpack.c.l.b16 %v923
        %v968 = vunpack.c.l.b16 %v924
        %v969 = vpack.c.b16 %v968, %v967
        %v972 = vsel %vm600, %v957, 0
        %v975 = vsel %vm600, %v958, 0
        %v978 = vsel %vm600, %v959, 0
        %v981 = vsel %vm600, %v960, 0
        %v984 = vsel %vm600, %v961, 0
        %v987 = vsel %vm600, %v962, 0
        %v990 = vsel %vm600, %v963, 0
        %v993 = vsel %vm600, %v964, 0
        %995 = vmatprep.subr.bf16.mxu0 0
        %996 = vmatpush1.bf16.msra.mxu0 %v969
        %997 = vmatprep.subr.bf16.mxu0 0
        %998 = vmatpush1.bf16.msra.mxu0 0
        %999 = vmatprep.subr.bf16.mxu0 0
        %1000 = vmatpush1.bf16.msra.mxu0 0
        %1001 = vmatprep.subr.bf16.mxu0 0
        %1002 = vmatpush1.bf16.msra.mxu0 0
        %1003 = vmatprep.subr.bf16.mxu0 0
        %1004 = vmatpush1.bf16.msra.mxu0 0
        %1005 = vmatprep.subr.bf16.mxu0 0
        %1006 = vmatpush1.bf16.msra.mxu0 0
        %1007 = vmatprep.subr.bf16.mxu0 0
        %1008 = vmatpush1.bf16.msra.mxu0 0
        %1009 = vmatprep.subr.bf16.mxu0 0
        %1010 = vmatpush1.bf16.msra.mxu0 0
        %1011 = vmatprep.subr.bf16.mxu0 0
        %1012 = vmatpush1.bf16.msra.mxu0 0
        %1013 = vmatprep.subr.bf16.mxu0 0
        %1014 = vmatpush1.bf16.msra.mxu0 0
        %1015 = vmatprep.subr.bf16.mxu0 0
        %1016 = vmatpush1.bf16.msra.mxu0 0
        %1017 = vmatprep.subr.bf16.mxu0 0
        %1018 = vmatpush1.bf16.msra.mxu0 0
        %1019 = vmatprep.subr.bf16.mxu0 0
        %1020 = vmatpush1.bf16.msra.mxu0 0
        %1021 = vmatprep.subr.bf16.mxu0 0
        %1022 = vmatpush1.bf16.msra.mxu0 0
        %1023 = vmatprep.subr.bf16.mxu0 0
        %1024 = vmatpush1.bf16.msra.mxu0 0
        %1025 = vmatprep.subr.bf16.mxu0 0
        %1026 = vmatpush1.bf16.msra.mxu0 0
        %1027 = vmatprep.mubr.bf16.mxu0 0
        %1028 = vmatmul.mubr.bf16.gmra.mrb[0].mxu0 %v972
        %v1029 = vpop.f32.mrb[0].mxu0
        %v1030 = vadd.f32 0.0, %v1029
        %v1031 = vpop.f32.mrb[0].mxu0
        %v1032 = vpop.f32.mrb[0].mxu0
        %v1033 = vadd.f32 0.0, %v1032
        %v1034 = vpop.f32.mrb[0].mxu0
        %1035 = vmatprep.mubr.bf16.mxu0 0
        %1036 = vmatmul.mubr.bf16.gmra.mrb[0].mxu0 %v975
        %v1037 = vpop.f32.mrb[0].mxu0
        %v1038 = vadd.f32 0.0, %v1037
        %v1039 = vpop.f32.mrb[0].mxu0
        %v1040 = vpop.f32.mrb[0].mxu0
        %v1041 = vadd.f32 0.0, %v1040
        %v1042 = vpop.f32.mrb[0].mxu0
        %1043 = vmatprep.mubr.bf16.mxu0 0
        %1044 = vmatmul.mubr.bf16.gmra.mrb[0].mxu0 %v978
        %v1045 = vpop.f32.mrb[0].mxu0
        %v1046 = vadd.f32 0.0, %v1045
        %v1047 = vpop.f32.mrb[0].mxu0
        %v1048 = vpop.f32.mrb[0].mxu0
        %v1049 = vadd.f32 0.0, %v1048
        %v1050 = vpop.f32.mrb[0].mxu0
        %1051 = vmatprep.mubr.bf16.mxu0 0
        %1052 = vmatmul.mubr.bf16.gmra.mrb[0].mxu0 %v981
        %v1053 = vpop.f32.mrb[0].mxu0
        %v1054 = vadd.f32 0.0, %v1053
        %v1055 = vpop.f32.mrb[0].mxu0
        %v1056 = vpop.f32.mrb[0].mxu0
        %v1057 = vadd.f32 0.0, %v1056
        %v1058 = vpop.f32.mrb[0].mxu0
        %1059 = vmatprep.mubr.bf16.mxu0 0
        %1060 = vmatmul.mubr.bf16.gmra.mrb[0].mxu0 %v984
        %v1061 = vpop.f32.mrb[0].mxu0
        %v1062 = vadd.f32 0.0, %v1061
        %v1063 = vpop.f32.mrb[0].mxu0
        %v1064 = vpop.f32.mrb[0].mxu0
        %v1065 = vadd.f32 0.0, %v1064
        %v1066 = vpop.f32.mrb[0].mxu0
        %1067 = vmatprep.mubr.bf16.mxu0 0
        %1068 = vmatmul.mubr.bf16.gmra.mrb[0].mxu0 %v987
        %v1069 = vpop.f32.mrb[0].mxu0
        %v1070 = vadd.f32 0.0, %v1069
        %v1071 = vpop.f32.mrb[0].mxu0
        %v1072 = vpop.f32.mrb[0].mxu0
        %v1073 = vadd.f32 0.0, %v1072
        %v1074 = vpop.f32.mrb[0].mxu0
        %1075 = vmatprep.mubr.bf16.mxu0 0
        %1076 = vmatmul.mubr.bf16.gmra.mrb[0].mxu0 %v990
        %v1077 = vpop.f32.mrb[0].mxu0
        %v1078 = vadd.f32 0.0, %v1077
        %v1079 = vpop.f32.mrb[0].mxu0
        %v1080 = vpop.f32.mrb[0].mxu0
        %v1081 = vadd.f32 0.0, %v1080
        %v1082 = vpop.f32.mrb[0].mxu0
        %1083 = vmatprep.mubr.bf16.mxu0 0
        %1084 = vmatmul.mubr.bf16.gmra.mrb[0].mxu0 %v993
        %v1085 = vpop.f32.mrb[0].mxu0
        %v1086 = vadd.f32 0.0, %v1085
        %v1087 = vpop.f32.mrb[0].mxu0
        %v1088 = vpop.f32.mrb[0].mxu0
        %v1089 = vadd.f32 0.0, %v1088
        %v1090 = vpop.f32.mrb[0].mxu0
        %1091 = vdwg.mxu0
        %v1092 = vpack.c.bf16 %v663, %v660
        %v1093 = vpack.c.bf16 %v671, %v668
        %v1094 = vpack.c.bf16 %v679, %v676
        %v1095 = vpack.c.bf16 %v687, %v684
        %v1096 = vpack.c.bf16 %v695, %v692
        %v1097 = vpack.c.bf16 %v703, %v700
        %v1098 = vpack.c.bf16 %v711, %v708
        %v1099 = vpack.c.bf16 %v719, %v716
        %v1100 = vpack.c.bf16 %v848, %v845
        %v1101 = vpack.c.bf16 %v856, %v853
        %v1102 = vpack.c.bf16 %v864, %v861
        %v1103 = vpack.c.bf16 %v872, %v869
        %v1104 = vpack.c.bf16 %v880, %v877
        %v1105 = vpack.c.bf16 %v888, %v885
        %v1106 = vpack.c.bf16 %v896, %v893
        %v1107 = vpack.c.bf16 %v904, %v901
        %v1109 = vsel %vm600, %v1092, 0
        %v1112 = vsel %vm600, %v1100, 0
        %1114 = vmatprep.subr.bf16.mxu0 0
        %1115 = vmatpush1.bf16.xpose.msra.mxu0 %v1112
        %1116 = vmatprep.subr.bf16.mxu0 0
        %1117 = vmatpush1.bf16.xpose.msra.mxu0 0
        %1118 = vmatprep.subr.bf16.mxu0 0
        %1119 = vmatpush1.bf16.xpose.msra.mxu0 0
        %1120 = vmatprep.subr.bf16.mxu0 0
        %1121 = vmatpush1.bf16.xpose.msra.mxu0 0
        %1122 = vmatprep.subr.bf16.mxu0 0
        %1123 = vmatpush1.bf16.xpose.msra.mxu0 0
        %1124 = vmatprep.subr.bf16.mxu0 0
        %1125 = vmatpush1.bf16.xpose.msra.mxu0 0
        %1126 = vmatprep.subr.bf16.mxu0 0
        %1127 = vmatpush1.bf16.xpose.msra.mxu0 0
        %1128 = vmatprep.subr.bf16.mxu0 0
        %1129 = vmatpush1.bf16.xpose.msra.mxu0 0
        %1130 = vmatprep.subr.bf16.mxu0 0
        %1131 = vmatpush1.bf16.xpose.msra.mxu0 0
        %1132 = vmatprep.subr.bf16.mxu0 0
        %1133 = vmatpush1.bf16.xpose.msra.mxu0 0
        %1134 = vmatprep.subr.bf16.mxu0 0
        %1135 = vmatpush1.bf16.xpose.msra.mxu0 0
        %1136 = vmatprep.subr.bf16.mxu0 0
        %1137 = vmatpush1.bf16.xpose.msra.mxu0 0
        %1138 = vmatprep.subr.bf16.mxu0 0
        %1139 = vmatpush1.bf16.xpose.msra.mxu0 0
        %1140 = vmatprep.subr.bf16.mxu0 0
        %1141 = vmatpush1.bf16.xpose.msra.mxu0 0
        %1142 = vmatprep.subr.bf16.mxu0 0
        %1143 = vmatpush1.bf16.xpose.msra.mxu0 0
        %1144 = vmatprep.subr.bf16.mxu0 0
        %1145 = vmatpush1.bf16.xpose.msra.mxu0 0
        %1146 = vmatprep.mubr.bf16.mxu0 0
        %1147 = vmatmul.mubr.bf16.gmra.mrb[0].mxu0 %v1109
        %v1148 = vpop.f32.mrb[0].mxu0
        %v1149 = vadd.f32 0.0, %v1148
        %v1150 = vpop.f32.mrb[0].mxu0
        %v1151 = vpop.f32.mrb[0].mxu0
        %v1152 = vadd.f32 0.0, %v1151
        %v1153 = vpop.f32.mrb[0].mxu0
        %1154 = vdwg.mxu0
        %v1156 = vsel %vm600, %v1093, 0
        %v1159 = vsel %vm600, %v1101, 0
        %1161 = vmatprep.subr.bf16.mxu0 0
        %1162 = vmatpush1.bf16.xpose.msra.mxu0 %v1159
        %1163 = vmatprep.subr.bf16.mxu0 0
        %1164 = vmatpush1.bf16.xpose.msra.mxu0 0
        %1165 = vmatprep.subr.bf16.mxu0 0
        %1166 = vmatpush1.bf16.xpose.msra.mxu0 0
        %1167 = vmatprep.subr.bf16.mxu0 0
        %1168 = vmatpush1.bf16.xpose.msra.mxu0 0
        %1169 = vmatprep.subr.bf16.mxu0 0
        %1170 = vmatpush1.bf16.xpose.msra.mxu0 0
        %1171 = vmatprep.subr.bf16.mxu0 0
        %1172 = vmatpush1.bf16.xpose.msra.mxu0 0
        %1173 = vmatprep.subr.bf16.mxu0 0
        %1174 = vmatpush1.bf16.xpose.msra.mxu0 0
        %1175 = vmatprep.subr.bf16.mxu0 0
        %1176 = vmatpush1.bf16.xpose.msra.mxu0 0
        %1177 = vmatprep.subr.bf16.mxu0 0
        %1178 = vmatpush1.bf16.xpose.msra.mxu0 0
        %1179 = vmatprep.subr.bf16.mxu0 0
        %1180 = vmatpush1.bf16.xpose.msra.mxu0 0
        %1181 = vmatprep.subr.bf16.mxu0 0
        %1182 = vmatpush1.bf16.xpose.msra.mxu0 0
        %1183 = vmatprep.subr.bf16.mxu0 0
        %1184 = vmatpush1.bf16.xpose.msra.mxu0 0
        %1185 = vmatprep.subr.bf16.mxu0 0
        %1186 = vmatpush1.bf16.xpose.msra.mxu0 0
        %1187 = vmatprep.subr.bf16.mxu0 0
        %1188 = vmatpush1.bf16.xpose.msra.mxu0 0
        %1189 = vmatprep.subr.bf16.mxu0 0
        %1190 = vmatpush1.bf16.xpose.msra.mxu0 0
        %1191 = vmatprep.subr.bf16.mxu0 0
        %1192 = vmatpush1.bf16.xpose.msra.mxu0 0
        %1193 = vmatprep.mubr.bf16.mxu0 0
        %1194 = vmatmul.mubr.bf16.gmra.mrb[0].mxu0 %v1156
        %v1195 = vpop.f32.mrb[0].mxu0
        %v1196 = vadd.f32 0.0, %v1195
        %v1197 = vpop.f32.mrb[0].mxu0
        %v1198 = vpop.f32.mrb[0].mxu0
        %v1199 = vadd.f32 0.0, %v1198
        %v1200 = vpop.f32.mrb[0].mxu0
        %1201 = vdwg.mxu0
        %v1203 = vsel %vm600, %v1094, 0
        %v1206 = vsel %vm600, %v1102, 0
        %1208 = vmatprep.subr.bf16.mxu0 0
        %1209 = vmatpush1.bf16.xpose.msra.mxu0 %v1206
        %1210 = vmatprep.subr.bf16.mxu0 0
        %1211 = vmatpush1.bf16.xpose.msra.mxu0 0
        %1212 = vmatprep.subr.bf16.mxu0 0
        %1213 = vmatpush1.bf16.xpose.msra.mxu0 0
        %1214 = vmatprep.subr.bf16.mxu0 0
        %1215 = vmatpush1.bf16.xpose.msra.mxu0 0
        %1216 = vmatprep.subr.bf16.mxu0 0
        %1217 = vmatpush1.bf16.xpose.msra.mxu0 0
        %1218 = vmatprep.subr.bf16.mxu0 0
        %1219 = vmatpush1.bf16.xpose.msra.mxu0 0
        %1220 = vmatprep.subr.bf16.mxu0 0
        %1221 = vmatpush1.bf16.xpose.msra.mxu0 0
        %1222 = vmatprep.subr.bf16.mxu0 0
        %1223 = vmatpush1.bf16.xpose.msra.mxu0 0
        %1224 = vmatprep.subr.bf16.mxu0 0
        %1225 = vmatpush1.bf16.xpose.msra.mxu0 0
        %1226 = vmatprep.subr.bf16.mxu0 0
        %1227 = vmatpush1.bf16.xpose.msra.mxu0 0
        %1228 = vmatprep.subr.bf16.mxu0 0
        %1229 = vmatpush1.bf16.xpose.msra.mxu0 0
        %1230 = vmatprep.subr.bf16.mxu0 0
        %1231 = vmatpush1.bf16.xpose.msra.mxu0 0
        %1232 = vmatprep.subr.bf16.mxu0 0
        %1233 = vmatpush1.bf16.xpose.msra.mxu0 0
        %1234 = vmatprep.subr.bf16.mxu0 0
        %1235 = vmatpush1.bf16.xpose.msra.mxu0 0
        %1236 = vmatprep.subr.bf16.mxu0 0
        %1237 = vmatpush1.bf16.xpose.msra.mxu0 0
        %1238 = vmatprep.subr.bf16.mxu0 0
        %1239 = vmatpush1.bf16.xpose.msra.mxu0 0
        %1240 = vmatprep.mubr.bf16.mxu0 0
        %1241 = vmatmul.mubr.bf16.gmra.mrb[0].mxu0 %v1203
        %v1242 = vpop.f32.mrb[0].mxu0
        %v1243 = vadd.f32 0.0, %v1242
        %v1244 = vpop.f32.mrb[0].mxu0
        %v1245 = vpop.f32.mrb[0].mxu0
        %v1246 = vadd.f32 0.0, %v1245
        %v1247 = vpop.f32.mrb[0].mxu0
        %1248 = vdwg.mxu0
        %v1250 = vsel %vm600, %v1095, 0
        %v1253 = vsel %vm600, %v1103, 0
        %1255 = vmatprep.subr.bf16.mxu0 0
        %1256 = vmatpush1.bf16.xpose.msra.mxu0 %v1253
        %1257 = vmatprep.subr.bf16.mxu0 0
        %1258 = vmatpush1.bf16.xpose.msra.mxu0 0
        %1259 = vmatprep.subr.bf16.mxu0 0
        %1260 = vmatpush1.bf16.xpose.msra.mxu0 0
        %1261 = vmatprep.subr.bf16.mxu0 0
        %1262 = vmatpush1.bf16.xpose.msra.mxu0 0
        %1263 = vmatprep.subr.bf16.mxu0 0
        %1264 = vmatpush1.bf16.xpose.msra.mxu0 0
        %1265 = vmatprep.subr.bf16.mxu0 0
        %1266 = vmatpush1.bf16.xpose.msra.mxu0 0
        %1267 = vmatprep.subr.bf16.mxu0 0
        %1268 = vmatpush1.bf16.xpose.msra.mxu0 0
        %1269 = vmatprep.subr.bf16.mxu0 0
        %1270 = vmatpush1.bf16.xpose.msra.mxu0 0
        %1271 = vmatprep.subr.bf16.mxu0 0
        %1272 = vmatpush1.bf16.xpose.msra.mxu0 0
        %1273 = vmatprep.subr.bf16.mxu0 0
        %1274 = vmatpush1.bf16.xpose.msra.mxu0 0
        %1275 = vmatprep.subr.bf16.mxu0 0
        %1276 = vmatpush1.bf16.xpose.msra.mxu0 0
        %1277 = vmatprep.subr.bf16.mxu0 0
        %1278 = vmatpush1.bf16.xpose.msra.mxu0 0
        %1279 = vmatprep.subr.bf16.mxu0 0
        %1280 = vmatpush1.bf16.xpose.msra.mxu0 0
        %1281 = vmatprep.subr.bf16.mxu0 0
        %1282 = vmatpush1.bf16.xpose.msra.mxu0 0
        %1283 = vmatprep.subr.bf16.mxu0 0
        %1284 = vmatpush1.bf16.xpose.msra.mxu0 0
        %1285 = vmatprep.subr.bf16.mxu0 0
        %1286 = vmatpush1.bf16.xpose.msra.mxu0 0
        %1287 = vmatprep.mubr.bf16.mxu0 0
        %1288 = vmatmul.mubr.bf16.gmra.mrb[0].mxu0 %v1250
        %v1289 = vpop.f32.mrb[0].mxu0
        %v1290 = vadd.f32 0.0, %v1289
        %v1291 = vpop.f32.mrb[0].mxu0
        %v1292 = vpop.f32.mrb[0].mxu0
        %v1293 = vadd.f32 0.0, %v1292
        %v1294 = vpop.f32.mrb[0].mxu0
        %1295 = vdwg.mxu0
        %v1297 = vsel %vm600, %v1096, 0
        %v1300 = vsel %vm600, %v1104, 0
        %1302 = vmatprep.subr.bf16.mxu0 0
        %1303 = vmatpush1.bf16.xpose.msra.mxu0 %v1300
        %1304 = vmatprep.subr.bf16.mxu0 0
        %1305 = vmatpush1.bf16.xpose.msra.mxu0 0
        %1306 = vmatprep.subr.bf16.mxu0 0
        %1307 = vmatpush1.bf16.xpose.msra.mxu0 0
        %1308 = vmatprep.subr.bf16.mxu0 0
        %1309 = vmatpush1.bf16.xpose.msra.mxu0 0
        %1310 = vmatprep.subr.bf16.mxu0 0
        %1311 = vmatpush1.bf16.xpose.msra.mxu0 0
        %1312 = vmatprep.subr.bf16.mxu0 0
        %1313 = vmatpush1.bf16.xpose.msra.mxu0 0
        %1314 = vmatprep.subr.bf16.mxu0 0
        %1315 = vmatpush1.bf16.xpose.msra.mxu0 0
        %1316 = vmatprep.subr.bf16.mxu0 0
        %1317 = vmatpush1.bf16.xpose.msra.mxu0 0
        %1318 = vmatprep.subr.bf16.mxu0 0
        %1319 = vmatpush1.bf16.xpose.msra.mxu0 0
        %1320 = vmatprep.subr.bf16.mxu0 0
        %1321 = vmatpush1.bf16.xpose.msra.mxu0 0
        %1322 = vmatprep.subr.bf16.mxu0 0
        %1323 = vmatpush1.bf16.xpose.msra.mxu0 0
        %1324 = vmatprep.subr.bf16.mxu0 0
        %1325 = vmatpush1.bf16.xpose.msra.mxu0 0
        %1326 = vmatprep.subr.bf16.mxu0 0
        %1327 = vmatpush1.bf16.xpose.msra.mxu0 0
        %1328 = vmatprep.subr.bf16.mxu0 0
        %1329 = vmatpush1.bf16.xpose.msra.mxu0 0
        %1330 = vmatprep.subr.bf16.mxu0 0
        %1331 = vmatpush1.bf16.xpose.msra.mxu0 0
        %1332 = vmatprep.subr.bf16.mxu0 0
        %1333 = vmatpush1.bf16.xpose.msra.mxu0 0
        %1334 = vmatprep.mubr.bf16.mxu0 0
        %1335 = vmatmul.mubr.bf16.gmra.mrb[0].mxu0 %v1297
        %v1336 = vpop.f32.mrb[0].mxu0
        %v1337 = vadd.f32 0.0, %v1336
        %v1338 = vpop.f32.mrb[0].mxu0
        %v1339 = vpop.f32.mrb[0].mxu0
        %v1340 = vadd.f32 0.0, %v1339
        %v1341 = vpop.f32.mrb[0].mxu0
        %1342 = vdwg.mxu0
        %v1344 = vsel %vm600, %v1097, 0
        %v1347 = vsel %vm600, %v1105, 0
        %1349 = vmatprep.subr.bf16.mxu0 0
        %1350 = vmatpush1.bf16.xpose.msra.mxu0 %v1347
        %1351 = vmatprep.subr.bf16.mxu0 0
        %1352 = vmatpush1.bf16.xpose.msra.mxu0 0
        %1353 = vmatprep.subr.bf16.mxu0 0
        %1354 = vmatpush1.bf16.xpose.msra.mxu0 0
        %1355 = vmatprep.subr.bf16.mxu0 0
        %1356 = vmatpush1.bf16.xpose.msra.mxu0 0
        %1357 = vmatprep.subr.bf16.mxu0 0
        %1358 = vmatpush1.bf16.xpose.msra.mxu0 0
        %1359 = vmatprep.subr.bf16.mxu0 0
        %1360 = vmatpush1.bf16.xpose.msra.mxu0 0
        %1361 = vmatprep.subr.bf16.mxu0 0
        %1362 = vmatpush1.bf16.xpose.msra.mxu0 0
        %1363 = vmatprep.subr.bf16.mxu0 0
        %1364 = vmatpush1.bf16.xpose.msra.mxu0 0
        %1365 = vmatprep.subr.bf16.mxu0 0
        %1366 = vmatpush1.bf16.xpose.msra.mxu0 0
        %1367 = vmatprep.subr.bf16.mxu0 0
        %1368 = vmatpush1.bf16.xpose.msra.mxu0 0
        %1369 = vmatprep.subr.bf16.mxu0 0
        %1370 = vmatpush1.bf16.xpose.msra.mxu0 0
        %1371 = vmatprep.subr.bf16.mxu0 0
        %1372 = vmatpush1.bf16.xpose.msra.mxu0 0
        %1373 = vmatprep.subr.bf16.mxu0 0
        %1374 = vmatpush1.bf16.xpose.msra.mxu0 0
        %1375 = vmatprep.subr.bf16.mxu0 0
        %1376 = vmatpush1.bf16.xpose.msra.mxu0 0
        %1377 = vmatprep.subr.bf16.mxu0 0
        %1378 = vmatpush1.bf16.xpose.msra.mxu0 0
        %1379 = vmatprep.subr.bf16.mxu0 0
        %1380 = vmatpush1.bf16.xpose.msra.mxu0 0
        %1381 = vmatprep.mubr.bf16.mxu0 0
        %1382 = vmatmul.mubr.bf16.gmra.mrb[0].mxu0 %v1344
        %v1383 = vpop.f32.mrb[0].mxu0
        %v1384 = vadd.f32 0.0, %v1383
        %v1385 = vpop.f32.mrb[0].mxu0
        %v1386 = vpop.f32.mrb[0].mxu0
        %v1387 = vadd.f32 0.0, %v1386
        %v1388 = vpop.f32.mrb[0].mxu0
        %1389 = vdwg.mxu0
        %v1391 = vsel %vm600, %v1098, 0
        %v1394 = vsel %vm600, %v1106, 0
        %1396 = vmatprep.subr.bf16.mxu0 0
        %1397 = vmatpush1.bf16.xpose.msra.mxu0 %v1394
        %1398 = vmatprep.subr.bf16.mxu0 0
        %1399 = vmatpush1.bf16.xpose.msra.mxu0 0
        %1400 = vmatprep.subr.bf16.mxu0 0
        %1401 = vmatpush1.bf16.xpose.msra.mxu0 0
        %1402 = vmatprep.subr.bf16.mxu0 0
        %1403 = vmatpush1.bf16.xpose.msra.mxu0 0
        %1404 = vmatprep.subr.bf16.mxu0 0
        %1405 = vmatpush1.bf16.xpose.msra.mxu0 0
        %1406 = vmatprep.subr.bf16.mxu0 0
        %1407 = vmatpush1.bf16.xpose.msra.mxu0 0
        %1408 = vmatprep.subr.bf16.mxu0 0
        %1409 = vmatpush1.bf16.xpose.msra.mxu0 0
        %1410 = vmatprep.subr.bf16.mxu0 0
        %1411 = vmatpush1.bf16.xpose.msra.mxu0 0
        %1412 = vmatprep.subr.bf16.mxu0 0
        %1413 = vmatpush1.bf16.xpose.msra.mxu0 0
        %1414 = vmatprep.subr.bf16.mxu0 0
        %1415 = vmatpush1.bf16.xpose.msra.mxu0 0
        %1416 = vmatprep.subr.bf16.mxu0 0
        %1417 = vmatpush1.bf16.xpose.msra.mxu0 0
        %1418 = vmatprep.subr.bf16.mxu0 0
        %1419 = vmatpush1.bf16.xpose.msra.mxu0 0
        %1420 = vmatprep.subr.bf16.mxu0 0
        %1421 = vmatpush1.bf16.xpose.msra.mxu0 0
        %1422 = vmatprep.subr.bf16.mxu0 0
        %1423 = vmatpush1.bf16.xpose.msra.mxu0 0
        %1424 = vmatprep.subr.bf16.mxu0 0
        %1425 = vmatpush1.bf16.xpose.msra.mxu0 0
        %1426 = vmatprep.subr.bf16.mxu0 0
        %1427 = vmatpush1.bf16.xpose.msra.mxu0 0
        %1428 = vmatprep.mubr.bf16.mxu0 0
        %1429 = vmatmul.mubr.bf16.gmra.mrb[0].mxu0 %v1391
        %v1430 = vpop.f32.mrb[0].mxu0
        %v1431 = vadd.f32 0.0, %v1430
        %v1432 = vpop.f32.mrb[0].mxu0
        %v1433 = vpop.f32.mrb[0].mxu0
        %v1434 = vadd.f32 0.0, %v1433
        %v1435 = vpop.f32.mrb[0].mxu0
        %1436 = vdwg.mxu0
        %v1438 = vsel %vm600, %v1099, 0
        %v1441 = vsel %vm600, %v1107, 0
        %1443 = vmatprep.subr.bf16.mxu0 0
        %1444 = vmatpush1.bf16.xpose.msra.mxu0 %v1441
        %1445 = vmatprep.subr.bf16.mxu0 0
        %1446 = vmatpush1.bf16.xpose.msra.mxu0 0
        %1447 = vmatprep.subr.bf16.mxu0 0
        %1448 = vmatpush1.bf16.xpose.msra.mxu0 0
        %1449 = vmatprep.subr.bf16.mxu0 0
        %1450 = vmatpush1.bf16.xpose.msra.mxu0 0
        %1451 = vmatprep.subr.bf16.mxu0 0
        %1452 = vmatpush1.bf16.xpose.msra.mxu0 0
        %1453 = vmatprep.subr.bf16.mxu0 0
        %1454 = vmatpush1.bf16.xpose.msra.mxu0 0
        %1455 = vmatprep.subr.bf16.mxu0 0
        %1456 = vmatpush1.bf16.xpose.msra.mxu0 0
        %1457 = vmatprep.subr.bf16.mxu0 0
        %1458 = vmatpush1.bf16.xpose.msra.mxu0 0
        %1459 = vmatprep.subr.bf16.mxu0 0
        %1460 = vmatpush1.bf16.xpose.msra.mxu0 0
        %1461 = vmatprep.subr.bf16.mxu0 0
        %1462 = vmatpush1.bf16.xpose.msra.mxu0 0
        %1463 = vmatprep.subr.bf16.mxu0 0
        %1464 = vmatpush1.bf16.xpose.msra.mxu0 0
        %1465 = vmatprep.subr.bf16.mxu0 0
        %1466 = vmatpush1.bf16.xpose.msra.mxu0 0
        %1467 = vmatprep.subr.bf16.mxu0 0
        %1468 = vmatpush1.bf16.xpose.msra.mxu0 0
        %1469 = vmatprep.subr.bf16.mxu0 0
        %1470 = vmatpush1.bf16.xpose.msra.mxu0 0
        %1471 = vmatprep.subr.bf16.mxu0 0
        %1472 = vmatpush1.bf16.xpose.msra.mxu0 0
        %1473 = vmatprep.subr.bf16.mxu0 0
        %1474 = vmatpush1.bf16.xpose.msra.mxu0 0
        %1475 = vmatprep.mubr.bf16.mxu0 0
        %1476 = vmatmul.mubr.bf16.gmra.mrb[0].mxu0 %v1438
        %v1477 = vpop.f32.mrb[0].mxu0
        %v1478 = vadd.f32 0.0, %v1477
        %v1479 = vpop.f32.mrb[0].mxu0
        %v1480 = vpop.f32.mrb[0].mxu0
        %v1481 = vadd.f32 0.0, %v1480
        %v1482 = vpop.f32.mrb[0].mxu0
        %1483 = vdwg.mxu0
        %v1484 = vld [vmem:[%s470] sm:$0xff]
        %v1485 = vld [vmem:[%s470 + $0x8] sm:$0xff]
        %vm1486 = vcmp.eq.s32.totalorder %v1484, 0
        %vm1487 = vcmp.eq.s32.totalorder %v1485, 0
        %v1488 = vsel %vm1486, 1, 0
        %v1489 = vsel %vm1487, 1, 0
        %vm1490 = vcmp.eq.s32.totalorder %v1488, 1
        %vm1491 = vcmp.eq.s32.totalorder %v1489, 1
        %v1492 = vsel %vm1490, -1e+20, %v1149
        %v1493 = vsel %vm1491, -1e+20, %v1152
        %v1494 = vsel %vm1490, -1e+20, %v1196
        %v1495 = vsel %vm1491, -1e+20, %v1199
        %v1496 = vsel %vm1490, -1e+20, %v1243
        %v1497 = vsel %vm1491, -1e+20, %v1246
        %v1498 = vsel %vm1490, -1e+20, %v1290
        %v1499 = vsel %vm1491, -1e+20, %v1293
        %v1500 = vsel %vm1490, -1e+20, %v1337
        %v1501 = vsel %vm1491, -1e+20, %v1340
        %v1502 = vsel %vm1490, -1e+20, %v1384
        %v1503 = vsel %vm1491, -1e+20, %v1387
        %v1504 = vsel %vm1490, -1e+20, %v1431
        %v1505 = vsel %vm1491, -1e+20, %v1434
        %v1506 = vsel %vm1490, -1e+20, %v1478
        %v1507 = vsel %vm1491, -1e+20, %v1481
        %v1508 = vsel %vm600, %v1492, -inf
        %1509 = vmax.xlane.f32.xlu0 %v1508
        %v1510 = vpop.xlane.xlu0 %1509
        %v1511 = vsel %vm600, %v1493, -inf
        %1512 = vmax.xlane.f32.xlu0 %v1511
        %v1513 = vpop.xlane.xlu0 %1512
        %v1514 = vsel %vm600, %v1494, -inf
        %1515 = vmax.xlane.f32.xlu0 %v1514
        %v1516 = vpop.xlane.xlu0 %1515
        %v1517 = vsel %vm600, %v1495, -inf
        %1518 = vmax.xlane.f32.xlu0 %v1517
        %v1519 = vpop.xlane.xlu0 %1518
        %v1520 = vsel %vm600, %v1496, -inf
        %1521 = vmax.xlane.f32.xlu0 %v1520
        %v1522 = vpop.xlane.xlu0 %1521
        %v1523 = vsel %vm600, %v1497, -inf
        %1524 = vmax.xlane.f32.xlu0 %v1523
        %v1525 = vpop.xlane.xlu0 %1524
        %v1526 = vsel %vm600, %v1498, -inf
        %1527 = vmax.xlane.f32.xlu0 %v1526
        %v1528 = vpop.xlane.xlu0 %1527
        %v1529 = vsel %vm600, %v1499, -inf
        %1530 = vmax.xlane.f32.xlu0 %v1529
        %v1531 = vpop.xlane.xlu0 %1530
        %v1532 = vsel %vm600, %v1500, -inf
        %1533 = vmax.xlane.f32.xlu0 %v1532
        %v1534 = vpop.xlane.xlu0 %1533
        %v1535 = vsel %vm600, %v1501, -inf
        %1536 = vmax.xlane.f32.xlu0 %v1535
        %v1537 = vpop.xlane.xlu0 %1536
        %v1538 = vsel %vm600, %v1502, -inf
        %1539 = vmax.xlane.f32.xlu0 %v1538
        %v1540 = vpop.xlane.xlu0 %1539
        %v1541 = vsel %vm600, %v1503, -inf
        %1542 = vmax.xlane.f32.xlu0 %v1541
        %v1543 = vpop.xlane.xlu0 %1542
        %v1544 = vsel %vm600, %v1504, -inf
        %1545 = vmax.xlane.f32.xlu0 %v1544
        %v1546 = vpop.xlane.xlu0 %1545
        %v1547 = vsel %vm600, %v1505, -inf
        %1548 = vmax.xlane.f32.xlu0 %v1547
        %v1549 = vpop.xlane.xlu0 %1548
        %v1550 = vsel %vm600, %v1506, -inf
        %1551 = vmax.xlane.f32.xlu0 %v1550
        %v1552 = vpop.xlane.xlu0 %1551
        %v1553 = vsel %vm600, %v1507, -inf
        %1554 = vmax.xlane.f32.xlu0 %v1553
        %v1555 = vpop.xlane.xlu0 %1554
        %v1556 = vsub.f32 %v1492, %v1510
        %v1557 = vsub.f32 %v1493, %v1513
        %v1558 = vsub.f32 %v1494, %v1516
        %v1559 = vsub.f32 %v1495, %v1519
        %v1560 = vsub.f32 %v1496, %v1522
        %v1561 = vsub.f32 %v1497, %v1525
        %v1562 = vsub.f32 %v1498, %v1528
        %v1563 = vsub.f32 %v1499, %v1531
        %v1564 = vsub.f32 %v1500, %v1534
        %v1565 = vsub.f32 %v1501, %v1537
        %v1566 = vsub.f32 %v1502, %v1540
        %v1567 = vsub.f32 %v1503, %v1543
        %v1568 = vsub.f32 %v1504, %v1546
        %v1569 = vsub.f32 %v1505, %v1549
        %v1570 = vsub.f32 %v1506, %v1552
        %v1571 = vsub.f32 %v1507, %v1555
        %v1572 = vmul.f32 %v1556, 1.442695
        %v1573 = vpow.pop %v1572
        %v1574 = vmul.f32 %v1557, 1.442695
        %v1575 = vpow.pop %v1574
        %v1576 = vmul.f32 %v1558, 1.442695
        %v1577 = vpow.pop %v1576
        %v1578 = vmul.f32 %v1559, 1.442695
        %v1579 = vpow.pop %v1578
        %v1580 = vmul.f32 %v1560, 1.442695
        %v1581 = vpow.pop %v1580
        %v1582 = vmul.f32 %v1561, 1.442695
        %v1583 = vpow.pop %v1582
        %v1584 = vmul.f32 %v1562, 1.442695
        %v1585 = vpow.pop %v1584
        %v1586 = vmul.f32 %v1563, 1.442695
        %v1587 = vpow.pop %v1586
        %v1588 = vmul.f32 %v1564, 1.442695
        %v1589 = vpow.pop %v1588
        %v1590 = vmul.f32 %v1565, 1.442695
        %v1591 = vpow.pop %v1590
        %v1592 = vmul.f32 %v1566, 1.442695
        %v1593 = vpow.pop %v1592
        %v1594 = vmul.f32 %v1567, 1.442695
        %v1595 = vpow.pop %v1594
        %v1596 = vmul.f32 %v1568, 1.442695
        %v1597 = vpow.pop %v1596
        %v1598 = vmul.f32 %v1569, 1.442695
        %v1599 = vpow.pop %v1598
        %v1600 = vmul.f32 %v1570, 1.442695
        %v1601 = vpow.pop %v1600
        %v1602 = vmul.f32 %v1571, 1.442695
        %v1603 = vpow.pop %v1602
        %v1604 = vsel %vm600, %v1573, 0.0
        %1605 = vadd.xlane.f32.xlu0 %v1604
        %v1606 = vpop.xlane.xlu0 %1605
        %v1607 = vsel %vm600, %v1575, 0.0
        %1608 = vadd.xlane.f32.xlu0 %v1607
        %v1609 = vpop.xlane.xlu0 %1608
        %v1610 = vsel %vm600, %v1577, 0.0
        %1611 = vadd.xlane.f32.xlu0 %v1610
        %v1612 = vpop.xlane.xlu0 %1611
        %v1613 = vsel %vm600, %v1579, 0.0
        %1614 = vadd.xlane.f32.xlu0 %v1613
        %v1615 = vpop.xlane.xlu0 %1614
        %v1616 = vsel %vm600, %v1581, 0.0
        %1617 = vadd.xlane.f32.xlu0 %v1616
        %v1618 = vpop.xlane.xlu0 %1617
        %v1619 = vsel %vm600, %v1583, 0.0
        %1620 = vadd.xlane.f32.xlu0 %v1619
        %v1621 = vpop.xlane.xlu0 %1620
        %v1622 = vsel %vm600, %v1585, 0.0
        %1623 = vadd.xlane.f32.xlu0 %v1622
        %v1624 = vpop.xlane.xlu0 %1623
        %v1625 = vsel %vm600, %v1587, 0.0
        %1626 = vadd.xlane.f32.xlu0 %v1625
        %v1627 = vpop.xlane.xlu0 %1626
        %v1628 = vsel %vm600, %v1589, 0.0
        %1629 = vadd.xlane.f32.xlu0 %v1628
        %v1630 = vpop.xlane.xlu0 %1629
        %v1631 = vsel %vm600, %v1591, 0.0
        %1632 = vadd.xlane.f32.xlu0 %v1631
        %v1633 = vpop.xlane.xlu0 %1632
        %v1634 = vsel %vm600, %v1593, 0.0
        %1635 = vadd.xlane.f32.xlu0 %v1634
        %v1636 = vpop.xlane.xlu0 %1635
        %v1637 = vsel %vm600, %v1595, 0.0
        %1638 = vadd.xlane.f32.xlu0 %v1637
        %v1639 = vpop.xlane.xlu0 %1638
        %v1640 = vsel %vm600, %v1597, 0.0
        %1641 = vadd.xlane.f32.xlu0 %v1640
        %v1642 = vpop.xlane.xlu0 %1641
        %v1643 = vsel %vm600, %v1599, 0.0
        %1644 = vadd.xlane.f32.xlu0 %v1643
        %v1645 = vpop.xlane.xlu0 %1644
        %v1646 = vsel %vm600, %v1601, 0.0
        %1647 = vadd.xlane.f32.xlu0 %v1646
        %v1648 = vpop.xlane.xlu0 %1647
        %v1649 = vsel %vm600, %v1603, 0.0
        %1650 = vadd.xlane.f32.xlu0 %v1649
        %v1651 = vpop.xlane.xlu0 %1650
        %v1652 = vrcp.pop %v1606
        %v1653 = vrcp.pop %v1609
        %v1654 = vrcp.pop %v1612
        %v1655 = vrcp.pop %v1615
        %v1656 = vrcp.pop %v1618
        %v1657 = vrcp.pop %v1621
        %v1658 = vrcp.pop %v1624
        %v1659 = vrcp.pop %v1627
        %v1660 = vrcp.pop %v1630
        %v1661 = vrcp.pop %v1633
        %v1662 = vrcp.pop %v1636
        %v1663 = vrcp.pop %v1639
        %v1664 = vrcp.pop %v1642
        %v1665 = vrcp.pop %v1645
        %v1666 = vrcp.pop %v1648
        %v1667 = vrcp.pop %v1651
        %v1668 = vmul.f32 %v1573, %v1652
        %v1669 = vmul.f32 %v1575, %v1653
        %v1670 = vmul.f32 %v1577, %v1654
        %v1671 = vmul.f32 %v1579, %v1655
        %v1672 = vmul.f32 %v1581, %v1656
        %v1673 = vmul.f32 %v1583, %v1657
        %v1674 = vmul.f32 %v1585, %v1658
        %v1675 = vmul.f32 %v1587, %v1659
        %v1676 = vmul.f32 %v1589, %v1660
        %v1677 = vmul.f32 %v1591, %v1661
        %v1678 = vmul.f32 %v1593, %v1662
        %v1679 = vmul.f32 %v1595, %v1663
        %v1680 = vmul.f32 %v1597, %v1664
        %v1681 = vmul.f32 %v1599, %v1665
        %v1682 = vmul.f32 %v1601, %v1666
        %v1683 = vmul.f32 %v1603, %v1667
        %1684 = vst.msk [vmem:[%s534] sm:$0xff] %vm600, %v1668
        %1685 = vst.msk [vmem:[%s534 + $0x8] sm:$0xff] %vm600, %v1669
        %1688 = vrot.lane.b32.xlu0 %v1670, 16
        %v1689 = vpop.permute.xlu0 %1688
        %1690 = vrot.lane.b32.xlu0 %v1671, 16
        %v1691 = vpop.permute.xlu0 %1690
        %vm1694 = vcmask 261248
        %1695 = vst.msk [vmem:[%s534] sm:$0xff] %vm1694, %v1689
        %1696 = vst.msk [vmem:[%s534 + $0x8] sm:$0xff] %vm1694, %v1691
        %1699 = vrot.lane.b32.xlu0 %v1672, 32
        %v1700 = vpop.permute.xlu0 %1699
        %1701 = vrot.lane.b32.xlu0 %v1673, 32
        %v1702 = vpop.permute.xlu0 %1701
        %vm1705 = vcmask 392448
        %1706 = vst.msk [vmem:[%s534] sm:$0xff] %vm1705, %v1700
        %1707 = vst.msk [vmem:[%s534 + $0x8] sm:$0xff] %vm1705, %v1702
        %1710 = vrot.lane.b32.xlu0 %v1674, 48
        %v1711 = vpop.permute.xlu0 %1710
        %1712 = vrot.lane.b32.xlu0 %v1675, 48
        %v1713 = vpop.permute.xlu0 %1712
        %vm1716 = vcmask 523648
        %1717 = vst.msk [vmem:[%s534] sm:$0xff] %vm1716, %v1711
        %1718 = vst.msk [vmem:[%s534 + $0x8] sm:$0xff] %vm1716, %v1713
        %1721 = vrot.lane.b32.xlu0 %v1676, 64
        %v1722 = vpop.permute.xlu0 %1721
        %1723 = vrot.lane.b32.xlu0 %v1677, 64
        %v1724 = vpop.permute.xlu0 %1723
        %vm1727 = vcmask 654848
        %1728 = vst.msk [vmem:[%s534] sm:$0xff] %vm1727, %v1722
        %1729 = vst.msk [vmem:[%s534 + $0x8] sm:$0xff] %vm1727, %v1724
        %1732 = vrot.lane.b32.xlu0 %v1678, 80
        %v1733 = vpop.permute.xlu0 %1732
        %1734 = vrot.lane.b32.xlu0 %v1679, 80
        %v1735 = vpop.permute.xlu0 %1734
        %vm1738 = vcmask 786048
        %1739 = vst.msk [vmem:[%s534] sm:$0xff] %vm1738, %v1733
        %1740 = vst.msk [vmem:[%s534 + $0x8] sm:$0xff] %vm1738, %v1735
        %1743 = vrot.lane.b32.xlu0 %v1680, 96
        %v1744 = vpop.permute.xlu0 %1743
        %1745 = vrot.lane.b32.xlu0 %v1681, 96
        %v1746 = vpop.permute.xlu0 %1745
        %vm1749 = vcmask 917248
        %1750 = vst.msk [vmem:[%s534] sm:$0xff] %vm1749, %v1744
        %1751 = vst.msk [vmem:[%s534 + $0x8] sm:$0xff] %vm1749, %v1746
        %1754 = vrot.lane.b32.xlu0 %v1682, 112
        %v1755 = vpop.permute.xlu0 %1754
        %1756 = vrot.lane.b32.xlu0 %v1683, 112
        %v1757 = vpop.permute.xlu0 %1756
        %vm1760 = vcmask 1048448
        %1761 = vst.msk [vmem:[%s534] sm:$0xff] %vm1760, %v1755
        %1762 = vst.msk [vmem:[%s534 + $0x8] sm:$0xff] %vm1760, %v1757
        %v1763 = vpack.c.bf16 %v1669, %v1668
        %v1764 = vpack.c.bf16 %v1671, %v1670
        %v1765 = vpack.c.bf16 %v1673, %v1672
        %v1766 = vpack.c.bf16 %v1675, %v1674
        %v1767 = vpack.c.bf16 %v1677, %v1676
        %v1768 = vpack.c.bf16 %v1679, %v1678
        %v1769 = vpack.c.bf16 %v1681, %v1680
        %v1770 = vpack.c.bf16 %v1683, %v1682
        %v1771 = vpack.c.bf16 %v1033, %v1030
        %v1772 = vpack.c.bf16 %v1041, %v1038
        %v1773 = vpack.c.bf16 %v1049, %v1046
        %v1774 = vpack.c.bf16 %v1057, %v1054
        %v1775 = vpack.c.bf16 %v1065, %v1062
        %v1776 = vpack.c.bf16 %v1073, %v1070
        %v1777 = vpack.c.bf16 %v1081, %v1078
        %v1778 = vpack.c.bf16 %v1089, %v1086
        %v1780 = vsel %vm600, %v1763, 0
        %1782 = vmatprep.subr.bf16.mxu0 0
        %1783 = vmatpush1.bf16.msra.mxu0 %v1771
        %1784 = vmatprep.subr.bf16.mxu0 0
        %1785 = vmatpush1.bf16.msra.mxu0 0
        %1786 = vmatprep.subr.bf16.mxu0 0
        %1787 = vmatpush1.bf16.msra.mxu0 0
        %1788 = vmatprep.subr.bf16.mxu0 0
        %1789 = vmatpush1.bf16.msra.mxu0 0
        %1790 = vmatprep.subr.bf16.mxu0 0
        %1791 = vmatpush1.bf16.msra.mxu0 0
        %1792 = vmatprep.subr.bf16.mxu0 0
        %1793 = vmatpush1.bf16.msra.mxu0 0
        %1794 = vmatprep.subr.bf16.mxu0 0
        %1795 = vmatpush1.bf16.msra.mxu0 0
        %1796 = vmatprep.subr.bf16.mxu0 0
        %1797 = vmatpush1.bf16.msra.mxu0 0
        %1798 = vmatprep.subr.bf16.mxu0 0
        %1799 = vmatpush1.bf16.msra.mxu0 0
        %1800 = vmatprep.subr.bf16.mxu0 0
        %1801 = vmatpush1.bf16.msra.mxu0 0
        %1802 = vmatprep.subr.bf16.mxu0 0
        %1803 = vmatpush1.bf16.msra.mxu0 0
        %1804 = vmatprep.subr.bf16.mxu0 0
        %1805 = vmatpush1.bf16.msra.mxu0 0
        %1806 = vmatprep.subr.bf16.mxu0 0
        %1807 = vmatpush1.bf16.msra.mxu0 0
        %1808 = vmatprep.subr.bf16.mxu0 0
        %1809 = vmatpush1.bf16.msra.mxu0 0
        %1810 = vmatprep.subr.bf16.mxu0 0
        %1811 = vmatpush1.bf16.msra.mxu0 0
        %1812 = vmatprep.subr.bf16.mxu0 0
        %1813 = vmatpush1.bf16.msra.mxu0 0
        %1814 = vmatprep.mubr.bf16.mxu0 0
        %1815 = vmatmul.mubr.bf16.gmra.mrb[0].mxu0 %v1780
        %v1816 = vpop.f32.mrb[0].mxu0
        %v1817 = vadd.f32 0.0, %v1816
        %v1818 = vpop.f32.mrb[0].mxu0
        %v1819 = vpop.f32.mrb[0].mxu0
        %v1820 = vadd.f32 0.0, %v1819
        %v1821 = vpop.f32.mrb[0].mxu0
        %1822 = vdwg.mxu0
        %v1824 = vsel %vm600, %v1764, 0
        %1826 = vmatprep.subr.bf16.mxu0 0
        %1827 = vmatpush1.bf16.msra.mxu0 %v1772
        %1828 = vmatprep.subr.bf16.mxu0 0
        %1829 = vmatpush1.bf16.msra.mxu0 0
        %1830 = vmatprep.subr.bf16.mxu0 0
        %1831 = vmatpush1.bf16.msra.mxu0 0
        %1832 = vmatprep.subr.bf16.mxu0 0
        %1833 = vmatpush1.bf16.msra.mxu0 0
        %1834 = vmatprep.subr.bf16.mxu0 0
        %1835 = vmatpush1.bf16.msra.mxu0 0
        %1836 = vmatprep.subr.bf16.mxu0 0
        %1837 = vmatpush1.bf16.msra.mxu0 0
        %1838 = vmatprep.subr.bf16.mxu0 0
        %1839 = vmatpush1.bf16.msra.mxu0 0
        %1840 = vmatprep.subr.bf16.mxu0 0
        %1841 = vmatpush1.bf16.msra.mxu0 0
        %1842 = vmatprep.subr.bf16.mxu0 0
        %1843 = vmatpush1.bf16.msra.mxu0 0
        %1844 = vmatprep.subr.bf16.mxu0 0
        %1845 = vmatpush1.bf16.msra.mxu0 0
        %1846 = vmatprep.subr.bf16.mxu0 0
        %1847 = vmatpush1.bf16.msra.mxu0 0
        %1848 = vmatprep.subr.bf16.mxu0 0
        %1849 = vmatpush1.bf16.msra.mxu0 0
        %1850 = vmatprep.subr.bf16.mxu0 0
        %1851 = vmatpush1.bf16.msra.mxu0 0
        %1852 = vmatprep.subr.bf16.mxu0 0
        %1853 = vmatpush1.bf16.msra.mxu0 0
        %1854 = vmatprep.subr.bf16.mxu0 0
        %1855 = vmatpush1.bf16.msra.mxu0 0
        %1856 = vmatprep.subr.bf16.mxu0 0
        %1857 = vmatpush1.bf16.msra.mxu0 0
        %1858 = vmatprep.mubr.bf16.mxu0 0
        %1859 = vmatmul.mubr.bf16.gmra.mrb[0].mxu0 %v1824
        %v1860 = vpop.f32.mrb[0].mxu0
        %v1861 = vadd.f32 0.0, %v1860
        %v1862 = vpop.f32.mrb[0].mxu0
        %v1863 = vpop.f32.mrb[0].mxu0
        %v1864 = vadd.f32 0.0, %v1863
        %v1865 = vpop.f32.mrb[0].mxu0
        %1866 = vdwg.mxu0
        %v1868 = vsel %vm600, %v1765, 0
        %1870 = vmatprep.subr.bf16.mxu0 0
        %1871 = vmatpush1.bf16.msra.mxu0 %v1773
        %1872 = vmatprep.subr.bf16.mxu0 0
        %1873 = vmatpush1.bf16.msra.mxu0 0
        %1874 = vmatprep.subr.bf16.mxu0 0
        %1875 = vmatpush1.bf16.msra.mxu0 0
        %1876 = vmatprep.subr.bf16.mxu0 0
        %1877 = vmatpush1.bf16.msra.mxu0 0
        %1878 = vmatprep.subr.bf16.mxu0 0
        %1879 = vmatpush1.bf16.msra.mxu0 0
        %1880 = vmatprep.subr.bf16.mxu0 0
        %1881 = vmatpush1.bf16.msra.mxu0 0
        %1882 = vmatprep.subr.bf16.mxu0 0
        %1883 = vmatpush1.bf16.msra.mxu0 0
        %1884 = vmatprep.subr.bf16.mxu0 0
        %1885 = vmatpush1.bf16.msra.mxu0 0
        %1886 = vmatprep.subr.bf16.mxu0 0
        %1887 = vmatpush1.bf16.msra.mxu0 0
        %1888 = vmatprep.subr.bf16.mxu0 0
        %1889 = vmatpush1.bf16.msra.mxu0 0
        %1890 = vmatprep.subr.bf16.mxu0 0
        %1891 = vmatpush1.bf16.msra.mxu0 0
        %1892 = vmatprep.subr.bf16.mxu0 0
        %1893 = vmatpush1.bf16.msra.mxu0 0
        %1894 = vmatprep.subr.bf16.mxu0 0
        %1895 = vmatpush1.bf16.msra.mxu0 0
        %1896 = vmatprep.subr.bf16.mxu0 0
        %1897 = vmatpush1.bf16.msra.mxu0 0
        %1898 = vmatprep.subr.bf16.mxu0 0
        %1899 = vmatpush1.bf16.msra.mxu0 0
        %1900 = vmatprep.subr.bf16.mxu0 0
        %1901 = vmatpush1.bf16.msra.mxu0 0
        %1902 = vmatprep.mubr.bf16.mxu0 0
        %1903 = vmatmul.mubr.bf16.gmra.mrb[0].mxu0 %v1868
        %v1904 = vpop.f32.mrb[0].mxu0
        %v1905 = vadd.f32 0.0, %v1904
        %v1906 = vpop.f32.mrb[0].mxu0
        %v1907 = vpop.f32.mrb[0].mxu0
        %v1908 = vadd.f32 0.0, %v1907
        %v1909 = vpop.f32.mrb[0].mxu0
        %1910 = vdwg.mxu0
        %v1912 = vsel %vm600, %v1766, 0
        %1914 = vmatprep.subr.bf16.mxu0 0
        %1915 = vmatpush1.bf16.msra.mxu0 %v1774
        %1916 = vmatprep.subr.bf16.mxu0 0
        %1917 = vmatpush1.bf16.msra.mxu0 0
        %1918 = vmatprep.subr.bf16.mxu0 0
        %1919 = vmatpush1.bf16.msra.mxu0 0
        %1920 = vmatprep.subr.bf16.mxu0 0
        %1921 = vmatpush1.bf16.msra.mxu0 0
        %1922 = vmatprep.subr.bf16.mxu0 0
        %1923 = vmatpush1.bf16.msra.mxu0 0
        %1924 = vmatprep.subr.bf16.mxu0 0
        %1925 = vmatpush1.bf16.msra.mxu0 0
        %1926 = vmatprep.subr.bf16.mxu0 0
        %1927 = vmatpush1.bf16.msra.mxu0 0
        %1928 = vmatprep.subr.bf16.mxu0 0
        %1929 = vmatpush1.bf16.msra.mxu0 0
        %1930 = vmatprep.subr.bf16.mxu0 0
        %1931 = vmatpush1.bf16.msra.mxu0 0
        %1932 = vmatprep.subr.bf16.mxu0 0
        %1933 = vmatpush1.bf16.msra.mxu0 0
        %1934 = vmatprep.subr.bf16.mxu0 0
        %1935 = vmatpush1.bf16.msra.mxu0 0
        %1936 = vmatprep.subr.bf16.mxu0 0
        %1937 = vmatpush1.bf16.msra.mxu0 0
        %1938 = vmatprep.subr.bf16.mxu0 0
        %1939 = vmatpush1.bf16.msra.mxu0 0
        %1940 = vmatprep.subr.bf16.mxu0 0
        %1941 = vmatpush1.bf16.msra.mxu0 0
        %1942 = vmatprep.subr.bf16.mxu0 0
        %1943 = vmatpush1.bf16.msra.mxu0 0
        %1944 = vmatprep.subr.bf16.mxu0 0
        %1945 = vmatpush1.bf16.msra.mxu0 0
        %1946 = vmatprep.mubr.bf16.mxu0 0
        %1947 = vmatmul.mubr.bf16.gmra.mrb[0].mxu0 %v1912
        %v1948 = vpop.f32.mrb[0].mxu0
        %v1949 = vadd.f32 0.0, %v1948
        %v1950 = vpop.f32.mrb[0].mxu0
        %v1951 = vpop.f32.mrb[0].mxu0
        %v1952 = vadd.f32 0.0, %v1951
        %v1953 = vpop.f32.mrb[0].mxu0
        %1954 = vdwg.mxu0
        %v1956 = vsel %vm600, %v1767, 0
        %1958 = vmatprep.subr.bf16.mxu0 0
        %1959 = vmatpush1.bf16.msra.mxu0 %v1775
        %1960 = vmatprep.subr.bf16.mxu0 0
        %1961 = vmatpush1.bf16.msra.mxu0 0
        %1962 = vmatprep.subr.bf16.mxu0 0
        %1963 = vmatpush1.bf16.msra.mxu0 0
        %1964 = vmatprep.subr.bf16.mxu0 0
        %1965 = vmatpush1.bf16.msra.mxu0 0
        %1966 = vmatprep.subr.bf16.mxu0 0
        %1967 = vmatpush1.bf16.msra.mxu0 0
        %1968 = vmatprep.subr.bf16.mxu0 0
        %1969 = vmatpush1.bf16.msra.mxu0 0
        %1970 = vmatprep.subr.bf16.mxu0 0
        %1971 = vmatpush1.bf16.msra.mxu0 0
        %1972 = vmatprep.subr.bf16.mxu0 0
        %1973 = vmatpush1.bf16.msra.mxu0 0
        %1974 = vmatprep.subr.bf16.mxu0 0
        %1975 = vmatpush1.bf16.msra.mxu0 0
        %1976 = vmatprep.subr.bf16.mxu0 0
        %1977 = vmatpush1.bf16.msra.mxu0 0
        %1978 = vmatprep.subr.bf16.mxu0 0
        %1979 = vmatpush1.bf16.msra.mxu0 0
        %1980 = vmatprep.subr.bf16.mxu0 0
        %1981 = vmatpush1.bf16.msra.mxu0 0
        %1982 = vmatprep.subr.bf16.mxu0 0
        %1983 = vmatpush1.bf16.msra.mxu0 0
        %1984 = vmatprep.subr.bf16.mxu0 0
        %1985 = vmatpush1.bf16.msra.mxu0 0
        %1986 = vmatprep.subr.bf16.mxu0 0
        %1987 = vmatpush1.bf16.msra.mxu0 0
        %1988 = vmatprep.subr.bf16.mxu0 0
        %1989 = vmatpush1.bf16.msra.mxu0 0
        %1990 = vmatprep.mubr.bf16.mxu0 0
        %1991 = vmatmul.mubr.bf16.gmra.mrb[0].mxu0 %v1956
        %v1992 = vpop.f32.mrb[0].mxu0
        %v1993 = vadd.f32 0.0, %v1992
        %v1994 = vpop.f32.mrb[0].mxu0
        %v1995 = vpop.f32.mrb[0].mxu0
        %v1996 = vadd.f32 0.0, %v1995
        %v1997 = vpop.f32.mrb[0].mxu0
        %1998 = vdwg.mxu0
        %v2000 = vsel %vm600, %v1768, 0
        %2002 = vmatprep.subr.bf16.mxu0 0
        %2003 = vmatpush1.bf16.msra.mxu0 %v1776
        %2004 = vmatprep.subr.bf16.mxu0 0
        %2005 = vmatpush1.bf16.msra.mxu0 0
        %2006 = vmatprep.subr.bf16.mxu0 0
        %2007 = vmatpush1.bf16.msra.mxu0 0
        %2008 = vmatprep.subr.bf16.mxu0 0
        %2009 = vmatpush1.bf16.msra.mxu0 0
        %2010 = vmatprep.subr.bf16.mxu0 0
        %2011 = vmatpush1.bf16.msra.mxu0 0
        %2012 = vmatprep.subr.bf16.mxu0 0
        %2013 = vmatpush1.bf16.msra.mxu0 0
        %2014 = vmatprep.subr.bf16.mxu0 0
        %2015 = vmatpush1.bf16.msra.mxu0 0
        %2016 = vmatprep.subr.bf16.mxu0 0
        %2017 = vmatpush1.bf16.msra.mxu0 0
        %2018 = vmatprep.subr.bf16.mxu0 0
        %2019 = vmatpush1.bf16.msra.mxu0 0
        %2020 = vmatprep.subr.bf16.mxu0 0
        %2021 = vmatpush1.bf16.msra.mxu0 0
        %2022 = vmatprep.subr.bf16.mxu0 0
        %2023 = vmatpush1.bf16.msra.mxu0 0
        %2024 = vmatprep.subr.bf16.mxu0 0
        %2025 = vmatpush1.bf16.msra.mxu0 0
        %2026 = vmatprep.subr.bf16.mxu0 0
        %2027 = vmatpush1.bf16.msra.mxu0 0
        %2028 = vmatprep.subr.bf16.mxu0 0
        %2029 = vmatpush1.bf16.msra.mxu0 0
        %2030 = vmatprep.subr.bf16.mxu0 0
        %2031 = vmatpush1.bf16.msra.mxu0 0
        %2032 = vmatprep.subr.bf16.mxu0 0
        %2033 = vmatpush1.bf16.msra.mxu0 0
        %2034 = vmatprep.mubr.bf16.mxu0 0
        %2035 = vmatmul.mubr.bf16.gmra.mrb[0].mxu0 %v2000
        %v2036 = vpop.f32.mrb[0].mxu0
        %v2037 = vadd.f32 0.0, %v2036
        %v2038 = vpop.f32.mrb[0].mxu0
        %v2039 = vpop.f32.mrb[0].mxu0
        %v2040 = vadd.f32 0.0, %v2039
        %v2041 = vpop.f32.mrb[0].mxu0
        %2042 = vdwg.mxu0
        %v2044 = vsel %vm600, %v1769, 0
        %2046 = vmatprep.subr.bf16.mxu0 0
        %2047 = vmatpush1.bf16.msra.mxu0 %v1777
        %2048 = vmatprep.subr.bf16.mxu0 0
        %2049 = vmatpush1.bf16.msra.mxu0 0
        %2050 = vmatprep.subr.bf16.mxu0 0
        %2051 = vmatpush1.bf16.msra.mxu0 0
        %2052 = vmatprep.subr.bf16.mxu0 0
        %2053 = vmatpush1.bf16.msra.mxu0 0
        %2054 = vmatprep.subr.bf16.mxu0 0
        %2055 = vmatpush1.bf16.msra.mxu0 0
        %2056 = vmatprep.subr.bf16.mxu0 0
        %2057 = vmatpush1.bf16.msra.mxu0 0
        %2058 = vmatprep.subr.bf16.mxu0 0
        %2059 = vmatpush1.bf16.msra.mxu0 0
        %2060 = vmatprep.subr.bf16.mxu0 0
        %2061 = vmatpush1.bf16.msra.mxu0 0
        %2062 = vmatprep.subr.bf16.mxu0 0
        %2063 = vmatpush1.bf16.msra.mxu0 0
        %2064 = vmatprep.subr.bf16.mxu0 0
        %2065 = vmatpush1.bf16.msra.mxu0 0
        %2066 = vmatprep.subr.bf16.mxu0 0
        %2067 = vmatpush1.bf16.msra.mxu0 0
        %2068 = vmatprep.subr.bf16.mxu0 0
        %2069 = vmatpush1.bf16.msra.mxu0 0
        %2070 = vmatprep.subr.bf16.mxu0 0
        %2071 = vmatpush1.bf16.msra.mxu0 0
        %2072 = vmatprep.subr.bf16.mxu0 0
        %2073 = vmatpush1.bf16.msra.mxu0 0
        %2074 = vmatprep.subr.bf16.mxu0 0
        %2075 = vmatpush1.bf16.msra.mxu0 0
        %2076 = vmatprep.subr.bf16.mxu0 0
        %2077 = vmatpush1.bf16.msra.mxu0 0
        %2078 = vmatprep.mubr.bf16.mxu0 0
        %2079 = vmatmul.mubr.bf16.gmra.mrb[0].mxu0 %v2044
        %v2080 = vpop.f32.mrb[0].mxu0
        %v2081 = vadd.f32 0.0, %v2080
        %v2082 = vpop.f32.mrb[0].mxu0
        %v2083 = vpop.f32.mrb[0].mxu0
        %v2084 = vadd.f32 0.0, %v2083
        %v2085 = vpop.f32.mrb[0].mxu0
        %2086 = vdwg.mxu0
        %v2088 = vsel %vm600, %v1770, 0
        %2090 = vmatprep.subr.bf16.mxu0 0
        %2091 = vmatpush1.bf16.msra.mxu0 %v1778
        %2092 = vmatprep.subr.bf16.mxu0 0
        %2093 = vmatpush1.bf16.msra.mxu0 0
        %2094 = vmatprep.subr.bf16.mxu0 0
        %2095 = vmatpush1.bf16.msra.mxu0 0
        %2096 = vmatprep.subr.bf16.mxu0 0
        %2097 = vmatpush1.bf16.msra.mxu0 0
        %2098 = vmatprep.subr.bf16.mxu0 0
        %2099 = vmatpush1.bf16.msra.mxu0 0
        %2100 = vmatprep.subr.bf16.mxu0 0
        %2101 = vmatpush1.bf16.msra.mxu0 0
        %2102 = vmatprep.subr.bf16.mxu0 0
        %2103 = vmatpush1.bf16.msra.mxu0 0
        %2104 = vmatprep.subr.bf16.mxu0 0
        %2105 = vmatpush1.bf16.msra.mxu0 0
        %2106 = vmatprep.subr.bf16.mxu0 0
        %2107 = vmatpush1.bf16.msra.mxu0 0
        %2108 = vmatprep.subr.bf16.mxu0 0
        %2109 = vmatpush1.bf16.msra.mxu0 0
        %2110 = vmatprep.subr.bf16.mxu0 0
        %2111 = vmatpush1.bf16.msra.mxu0 0
        %2112 = vmatprep.subr.bf16.mxu0 0
        %2113 = vmatpush1.bf16.msra.mxu0 0
        %2114 = vmatprep.subr.bf16.mxu0 0
        %2115 = vmatpush1.bf16.msra.mxu0 0
        %2116 = vmatprep.subr.bf16.mxu0 0
        %2117 = vmatpush1.bf16.msra.mxu0 0
        %2118 = vmatprep.subr.bf16.mxu0 0
        %2119 = vmatpush1.bf16.msra.mxu0 0
        %2120 = vmatprep.subr.bf16.mxu0 0
        %2121 = vmatpush1.bf16.msra.mxu0 0
        %2122 = vmatprep.mubr.bf16.mxu0 0
        %2123 = vmatmul.mubr.bf16.gmra.mrb[0].mxu0 %v2088
        %v2124 = vpop.f32.mrb[0].mxu0
        %v2125 = vadd.f32 0.0, %v2124
        %v2126 = vpop.f32.mrb[0].mxu0
        %v2127 = vpop.f32.mrb[0].mxu0
        %v2128 = vadd.f32 0.0, %v2127
        %v2129 = vpop.f32.mrb[0].mxu0
        %2130 = vdwg.mxu0
        %v2131 = vpack.c.bf16 %v1820, %v1817
        %v2132 = vpack.c.bf16 %v1864, %v1861
        %v2133 = vpack.c.bf16 %v1908, %v1905
        %v2134 = vpack.c.bf16 %v1952, %v1949
        %v2135 = vpack.c.bf16 %v1996, %v1993
        %v2136 = vpack.c.bf16 %v2040, %v2037
        %v2137 = vpack.c.bf16 %v2084, %v2081
        %v2138 = vpack.c.bf16 %v2128, %v2125
        %v2139 = vld [vmem:[#allocation11] sm:$0xf]
        %v2140 = vld [vmem:[#allocation11 + $0x4] sm:$0xf]
        %v2141 = vld [vmem:[#allocation11 + $0x8] sm:$0xf]
        %v2142 = vld [vmem:[#allocation11 + $0xc] sm:$0xf]
        %v2143 = vld [vmem:[#allocation11 + $0x10] sm:$0xf]
        %v2144 = vld [vmem:[#allocation11 + $0x14] sm:$0xf]
        %v2145 = vld [vmem:[#allocation11 + $0x18] sm:$0xf]
        %v2146 = vld [vmem:[#allocation11 + $0x1c] sm:$0xf]
        %v2147 = vld [vmem:[#allocation11 + $0x20] sm:$0xf]
        %v2148 = vld [vmem:[#allocation11 + $0x24] sm:$0xf]
        %v2149 = vld [vmem:[#allocation11 + $0x28] sm:$0xf]
        %v2150 = vld [vmem:[#allocation11 + $0x2c] sm:$0xf]
        %v2151 = vld [vmem:[#allocation11 + $0x30] sm:$0xf]
        %v2152 = vld [vmem:[#allocation11 + $0x34] sm:$0xf]
        %v2153 = vld [vmem:[#allocation11 + $0x38] sm:$0xf]
        %v2154 = vld [vmem:[#allocation11 + $0x3c] sm:$0xf]
        %v2157 = vunpack.c.l.b16 %v2139
        %v2158 = vunpack.c.l.b16 %v2140
        %v2159 = vpack.c.b16 %v2158, %v2157
        %v2162 = vsel %vm600, %v2131, 0
        %2164 = vmatprep.subr.bf16.mxu0 0
        %2165 = vmatpush1.bf16.msra.mxu0 %v2159
        %2166 = vmatprep.subr.bf16.mxu0 0
        %2167 = vmatpush1.bf16.msra.mxu0 0
        %2168 = vmatprep.subr.bf16.mxu0 0
        %2169 = vmatpush1.bf16.msra.mxu0 0
        %2170 = vmatprep.subr.bf16.mxu0 0
        %2171 = vmatpush1.bf16.msra.mxu0 0
        %2172 = vmatprep.subr.bf16.mxu0 0
        %2173 = vmatpush1.bf16.msra.mxu0 0
        %2174 = vmatprep.subr.bf16.mxu0 0
        %2175 = vmatpush1.bf16.msra.mxu0 0
        %2176 = vmatprep.subr.bf16.mxu0 0
        %2177 = vmatpush1.bf16.msra.mxu0 0
        %2178 = vmatprep.subr.bf16.mxu0 0
        %2179 = vmatpush1.bf16.msra.mxu0 0
        %2180 = vmatprep.subr.bf16.mxu0 0
        %2181 = vmatpush1.bf16.msra.mxu0 0
        %2182 = vmatprep.subr.bf16.mxu0 0
        %2183 = vmatpush1.bf16.msra.mxu0 0
        %2184 = vmatprep.subr.bf16.mxu0 0
        %2185 = vmatpush1.bf16.msra.mxu0 0
        %2186 = vmatprep.subr.bf16.mxu0 0
        %2187 = vmatpush1.bf16.msra.mxu0 0
        %2188 = vmatprep.subr.bf16.mxu0 0
        %2189 = vmatpush1.bf16.msra.mxu0 0
        %2190 = vmatprep.subr.bf16.mxu0 0
        %2191 = vmatpush1.bf16.msra.mxu0 0
        %2192 = vmatprep.subr.bf16.mxu0 0
        %2193 = vmatpush1.bf16.msra.mxu0 0
        %2194 = vmatprep.subr.bf16.mxu0 0
        %2195 = vmatpush1.bf16.msra.mxu0 0
        %2196 = vmatprep.mubr.bf16.mxu0 0
        %2197 = vmatmul.mubr.bf16.gmra.mrb[0].mxu0 %v2162
        %v2198 = vpop.f32.mrb[0].mxu0
        %v2199 = vadd.f32 0.0, %v2198
        %v2200 = vpop.f32.mrb[0].mxu0
        %v2201 = vpop.f32.mrb[0].mxu0
        %v2202 = vadd.f32 0.0, %v2201
        %v2203 = vpop.f32.mrb[0].mxu0
        %2204 = vdwg.mxu0
        %v2207 = vunpack.c.l.b16 %v2141
        %v2208 = vunpack.c.l.b16 %v2142
        %v2209 = vpack.c.b16 %v2208, %v2207
        %v2212 = vsel %vm600, %v2132, 0
        %2214 = vmatprep.subr.bf16.mxu0 0
        %2215 = vmatpush1.bf16.msra.mxu0 %v2209
        %2216 = vmatprep.subr.bf16.mxu0 0
        %2217 = vmatpush1.bf16.msra.mxu0 0
        %2218 = vmatprep.subr.bf16.mxu0 0
        %2219 = vmatpush1.bf16.msra.mxu0 0
        %2220 = vmatprep.subr.bf16.mxu0 0
        %2221 = vmatpush1.bf16.msra.mxu0 0
        %2222 = vmatprep.subr.bf16.mxu0 0
        %2223 = vmatpush1.bf16.msra.mxu0 0
        %2224 = vmatprep.subr.bf16.mxu0 0
        %2225 = vmatpush1.bf16.msra.mxu0 0
        %2226 = vmatprep.subr.bf16.mxu0 0
        %2227 = vmatpush1.bf16.msra.mxu0 0
        %2228 = vmatprep.subr.bf16.mxu0 0
        %2229 = vmatpush1.bf16.msra.mxu0 0
        %2230 = vmatprep.subr.bf16.mxu0 0
        %2231 = vmatpush1.bf16.msra.mxu0 0
        %2232 = vmatprep.subr.bf16.mxu0 0
        %2233 = vmatpush1.bf16.msra.mxu0 0
        %2234 = vmatprep.subr.bf16.mxu0 0
        %2235 = vmatpush1.bf16.msra.mxu0 0
        %2236 = vmatprep.subr.bf16.mxu0 0
        %2237 = vmatpush1.bf16.msra.mxu0 0
        %2238 = vmatprep.subr.bf16.mxu0 0
        %2239 = vmatpush1.bf16.msra.mxu0 0
        %2240 = vmatprep.subr.bf16.mxu0 0
        %2241 = vmatpush1.bf16.msra.mxu0 0
        %2242 = vmatprep.subr.bf16.mxu0 0
        %2243 = vmatpush1.bf16.msra.mxu0 0
        %2244 = vmatprep.subr.bf16.mxu0 0
        %2245 = vmatpush1.bf16.msra.mxu0 0
        %2246 = vmatprep.mubr.bf16.mxu0 0
        %2247 = vmatmul.mubr.bf16.gmra.mrb[0].mxu0 %v2212
        %v2248 = vpop.f32.mrb[0].mxu0
        %v2249 = vadd.f32 0.0, %v2248
        %v2250 = vpop.f32.mrb[0].mxu0
        %v2251 = vpop.f32.mrb[0].mxu0
        %v2252 = vadd.f32 0.0, %v2251
        %v2253 = vpop.f32.mrb[0].mxu0
        %2254 = vdwg.mxu0
        %v2257 = vunpack.c.l.b16 %v2143
        %v2258 = vunpack.c.l.b16 %v2144
        %v2259 = vpack.c.b16 %v2258, %v2257
        %v2262 = vsel %vm600, %v2133, 0
        %2264 = vmatprep.subr.bf16.mxu0 0
        %2265 = vmatpush1.bf16.msra.mxu0 %v2259
        %2266 = vmatprep.subr.bf16.mxu0 0
        %2267 = vmatpush1.bf16.msra.mxu0 0
        %2268 = vmatprep.subr.bf16.mxu0 0
        %2269 = vmatpush1.bf16.msra.mxu0 0
        %2270 = vmatprep.subr.bf16.mxu0 0
        %2271 = vmatpush1.bf16.msra.mxu0 0
        %2272 = vmatprep.subr.bf16.mxu0 0
        %2273 = vmatpush1.bf16.msra.mxu0 0
        %2274 = vmatprep.subr.bf16.mxu0 0
        %2275 = vmatpush1.bf16.msra.mxu0 0
        %2276 = vmatprep.subr.bf16.mxu0 0
        %2277 = vmatpush1.bf16.msra.mxu0 0
        %2278 = vmatprep.subr.bf16.mxu0 0
        %2279 = vmatpush1.bf16.msra.mxu0 0
        %2280 = vmatprep.subr.bf16.mxu0 0
        %2281 = vmatpush1.bf16.msra.mxu0 0
        %2282 = vmatprep.subr.bf16.mxu0 0
        %2283 = vmatpush1.bf16.msra.mxu0 0
        %2284 = vmatprep.subr.bf16.mxu0 0
        %2285 = vmatpush1.bf16.msra.mxu0 0
        %2286 = vmatprep.subr.bf16.mxu0 0
        %2287 = vmatpush1.bf16.msra.mxu0 0
        %2288 = vmatprep.subr.bf16.mxu0 0
        %2289 = vmatpush1.bf16.msra.mxu0 0
        %2290 = vmatprep.subr.bf16.mxu0 0
        %2291 = vmatpush1.bf16.msra.mxu0 0
        %2292 = vmatprep.subr.bf16.mxu0 0
        %2293 = vmatpush1.bf16.msra.mxu0 0
        %2294 = vmatprep.subr.bf16.mxu0 0
        %2295 = vmatpush1.bf16.msra.mxu0 0
        %2296 = vmatprep.mubr.bf16.mxu0 0
        %2297 = vmatmul.mubr.bf16.gmra.mrb[0].mxu0 %v2262
        %v2298 = vpop.f32.mrb[0].mxu0
        %v2299 = vadd.f32 0.0, %v2298
        %v2300 = vpop.f32.mrb[0].mxu0
        %v2301 = vpop.f32.mrb[0].mxu0
        %v2302 = vadd.f32 0.0, %v2301
        %v2303 = vpop.f32.mrb[0].mxu0
        %2304 = vdwg.mxu0
        %v2307 = vunpack.c.l.b16 %v2145
        %v2308 = vunpack.c.l.b16 %v2146
        %v2309 = vpack.c.b16 %v2308, %v2307
        %v2312 = vsel %vm600, %v2134, 0
        %2314 = vmatprep.subr.bf16.mxu0 0
        %2315 = vmatpush1.bf16.msra.mxu0 %v2309
        %2316 = vmatprep.subr.bf16.mxu0 0
        %2317 = vmatpush1.bf16.msra.mxu0 0
        %2318 = vmatprep.subr.bf16.mxu0 0
        %2319 = vmatpush1.bf16.msra.mxu0 0
        %2320 = vmatprep.subr.bf16.mxu0 0
        %2321 = vmatpush1.bf16.msra.mxu0 0
        %2322 = vmatprep.subr.bf16.mxu0 0
        %2323 = vmatpush1.bf16.msra.mxu0 0
        %2324 = vmatprep.subr.bf16.mxu0 0
        %2325 = vmatpush1.bf16.msra.mxu0 0
        %2326 = vmatprep.subr.bf16.mxu0 0
        %2327 = vmatpush1.bf16.msra.mxu0 0
        %2328 = vmatprep.subr.bf16.mxu0 0
        %2329 = vmatpush1.bf16.msra.mxu0 0
        %2330 = vmatprep.subr.bf16.mxu0 0
        %2331 = vmatpush1.bf16.msra.mxu0 0
        %2332 = vmatprep.subr.bf16.mxu0 0
        %2333 = vmatpush1.bf16.msra.mxu0 0
        %2334 = vmatprep.subr.bf16.mxu0 0
        %2335 = vmatpush1.bf16.msra.mxu0 0
        %2336 = vmatprep.subr.bf16.mxu0 0
        %2337 = vmatpush1.bf16.msra.mxu0 0
        %2338 = vmatprep.subr.bf16.mxu0 0
        %2339 = vmatpush1.bf16.msra.mxu0 0
        %2340 = vmatprep.subr.bf16.mxu0 0
        %2341 = vmatpush1.bf16.msra.mxu0 0
        %2342 = vmatprep.subr.bf16.mxu0 0
        %2343 = vmatpush1.bf16.msra.mxu0 0
        %2344 = vmatprep.subr.bf16.mxu0 0
        %2345 = vmatpush1.bf16.msra.mxu0 0
        %2346 = vmatprep.mubr.bf16.mxu0 0
        %2347 = vmatmul.mubr.bf16.gmra.mrb[0].mxu0 %v2312
        %v2348 = vpop.f32.mrb[0].mxu0
        %v2349 = vadd.f32 0.0, %v2348
        %v2350 = vpop.f32.mrb[0].mxu0
        %v2351 = vpop.f32.mrb[0].mxu0
        %v2352 = vadd.f32 0.0, %v2351
        %v2353 = vpop.f32.mrb[0].mxu0
        %2354 = vdwg.mxu0
        %v2357 = vunpack.c.l.b16 %v2147
        %v2358 = vunpack.c.l.b16 %v2148
        %v2359 = vpack.c.b16 %v2358, %v2357
        %v2362 = vsel %vm600, %v2135, 0
        %2364 = vmatprep.subr.bf16.mxu0 0
        %2365 = vmatpush1.bf16.msra.mxu0 %v2359
        %2366 = vmatprep.subr.bf16.mxu0 0
        %2367 = vmatpush1.bf16.msra.mxu0 0
        %2368 = vmatprep.subr.bf16.mxu0 0
        %2369 = vmatpush1.bf16.msra.mxu0 0
        %2370 = vmatprep.subr.bf16.mxu0 0
        %2371 = vmatpush1.bf16.msra.mxu0 0
        %2372 = vmatprep.subr.bf16.mxu0 0
        %2373 = vmatpush1.bf16.msra.mxu0 0
        %2374 = vmatprep.subr.bf16.mxu0 0
        %2375 = vmatpush1.bf16.msra.mxu0 0
        %2376 = vmatprep.subr.bf16.mxu0 0
        %2377 = vmatpush1.bf16.msra.mxu0 0
        %2378 = vmatprep.subr.bf16.mxu0 0
        %2379 = vmatpush1.bf16.msra.mxu0 0
        %2380 = vmatprep.subr.bf16.mxu0 0
        %2381 = vmatpush1.bf16.msra.mxu0 0
        %2382 = vmatprep.subr.bf16.mxu0 0
        %2383 = vmatpush1.bf16.msra.mxu0 0
        %2384 = vmatprep.subr.bf16.mxu0 0
        %2385 = vmatpush1.bf16.msra.mxu0 0
        %2386 = vmatprep.subr.bf16.mxu0 0
        %2387 = vmatpush1.bf16.msra.mxu0 0
        %2388 = vmatprep.subr.bf16.mxu0 0
        %2389 = vmatpush1.bf16.msra.mxu0 0
        %2390 = vmatprep.subr.bf16.mxu0 0
        %2391 = vmatpush1.bf16.msra.mxu0 0
        %2392 = vmatprep.subr.bf16.mxu0 0
        %2393 = vmatpush1.bf16.msra.mxu0 0
        %2394 = vmatprep.subr.bf16.mxu0 0
        %2395 = vmatpush1.bf16.msra.mxu0 0
        %2396 = vmatprep.mubr.bf16.mxu0 0
        %2397 = vmatmul.mubr.bf16.gmra.mrb[0].mxu0 %v2362
        %v2398 = vpop.f32.mrb[0].mxu0
        %v2399 = vadd.f32 0.0, %v2398
        %v2400 = vpop.f32.mrb[0].mxu0
        %v2401 = vpop.f32.mrb[0].mxu0
        %v2402 = vadd.f32 0.0, %v2401
        %v2403 = vpop.f32.mrb[0].mxu0
        %2404 = vdwg.mxu0
        %v2407 = vunpack.c.l.b16 %v2149
        %v2408 = vunpack.c.l.b16 %v2150
        %v2409 = vpack.c.b16 %v2408, %v2407
        %v2412 = vsel %vm600, %v2136, 0
        %2414 = vmatprep.subr.bf16.mxu0 0
        %2415 = vmatpush1.bf16.msra.mxu0 %v2409
        %2416 = vmatprep.subr.bf16.mxu0 0
        %2417 = vmatpush1.bf16.msra.mxu0 0
        %2418 = vmatprep.subr.bf16.mxu0 0
        %2419 = vmatpush1.bf16.msra.mxu0 0
        %2420 = vmatprep.subr.bf16.mxu0 0
        %2421 = vmatpush1.bf16.msra.mxu0 0
        %2422 = vmatprep.subr.bf16.mxu0 0
        %2423 = vmatpush1.bf16.msra.mxu0 0
        %2424 = vmatprep.subr.bf16.mxu0 0
        %2425 = vmatpush1.bf16.msra.mxu0 0
        %2426 = vmatprep.subr.bf16.mxu0 0
        %2427 = vmatpush1.bf16.msra.mxu0 0
        %2428 = vmatprep.subr.bf16.mxu0 0
        %2429 = vmatpush1.bf16.msra.mxu0 0
        %2430 = vmatprep.subr.bf16.mxu0 0
        %2431 = vmatpush1.bf16.msra.mxu0 0
        %2432 = vmatprep.subr.bf16.mxu0 0
        %2433 = vmatpush1.bf16.msra.mxu0 0
        %2434 = vmatprep.subr.bf16.mxu0 0
        %2435 = vmatpush1.bf16.msra.mxu0 0
        %2436 = vmatprep.subr.bf16.mxu0 0
        %2437 = vmatpush1.bf16.msra.mxu0 0
        %2438 = vmatprep.subr.bf16.mxu0 0
        %2439 = vmatpush1.bf16.msra.mxu0 0
        %2440 = vmatprep.subr.bf16.mxu0 0
        %2441 = vmatpush1.bf16.msra.mxu0 0
        %2442 = vmatprep.subr.bf16.mxu0 0
        %2443 = vmatpush1.bf16.msra.mxu0 0
        %2444 = vmatprep.subr.bf16.mxu0 0
        %2445 = vmatpush1.bf16.msra.mxu0 0
        %2446 = vmatprep.mubr.bf16.mxu0 0
        %2447 = vmatmul.mubr.bf16.gmra.mrb[0].mxu0 %v2412
        %v2448 = vpop.f32.mrb[0].mxu0
        %v2449 = vadd.f32 0.0, %v2448
        %v2450 = vpop.f32.mrb[0].mxu0
        %v2451 = vpop.f32.mrb[0].mxu0
        %v2452 = vadd.f32 0.0, %v2451
        %v2453 = vpop.f32.mrb[0].mxu0
        %2454 = vdwg.mxu0
        %v2457 = vunpack.c.l.b16 %v2151
        %v2458 = vunpack.c.l.b16 %v2152
        %v2459 = vpack.c.b16 %v2458, %v2457
        %v2462 = vsel %vm600, %v2137, 0
        %2464 = vmatprep.subr.bf16.mxu0 0
        %2465 = vmatpush1.bf16.msra.mxu0 %v2459
        %2466 = vmatprep.subr.bf16.mxu0 0
        %2467 = vmatpush1.bf16.msra.mxu0 0
        %2468 = vmatprep.subr.bf16.mxu0 0
        %2469 = vmatpush1.bf16.msra.mxu0 0
        %2470 = vmatprep.subr.bf16.mxu0 0
        %2471 = vmatpush1.bf16.msra.mxu0 0
        %2472 = vmatprep.subr.bf16.mxu0 0
        %2473 = vmatpush1.bf16.msra.mxu0 0
        %2474 = vmatprep.subr.bf16.mxu0 0
        %2475 = vmatpush1.bf16.msra.mxu0 0
        %2476 = vmatprep.subr.bf16.mxu0 0
        %2477 = vmatpush1.bf16.msra.mxu0 0
        %2478 = vmatprep.subr.bf16.mxu0 0
        %2479 = vmatpush1.bf16.msra.mxu0 0
        %2480 = vmatprep.subr.bf16.mxu0 0
        %2481 = vmatpush1.bf16.msra.mxu0 0
        %2482 = vmatprep.subr.bf16.mxu0 0
        %2483 = vmatpush1.bf16.msra.mxu0 0
        %2484 = vmatprep.subr.bf16.mxu0 0
        %2485 = vmatpush1.bf16.msra.mxu0 0
        %2486 = vmatprep.subr.bf16.mxu0 0
        %2487 = vmatpush1.bf16.msra.mxu0 0
        %2488 = vmatprep.subr.bf16.mxu0 0
        %2489 = vmatpush1.bf16.msra.mxu0 0
        %2490 = vmatprep.subr.bf16.mxu0 0
        %2491 = vmatpush1.bf16.msra.mxu0 0
        %2492 = vmatprep.subr.bf16.mxu0 0
        %2493 = vmatpush1.bf16.msra.mxu0 0
        %2494 = vmatprep.subr.bf16.mxu0 0
        %2495 = vmatpush1.bf16.msra.mxu0 0
        %2496 = vmatprep.mubr.bf16.mxu0 0
        %2497 = vmatmul.mubr.bf16.gmra.mrb[0].mxu0 %v2462
        %v2498 = vpop.f32.mrb[0].mxu0
        %v2499 = vadd.f32 0.0, %v2498
        %v2500 = vpop.f32.mrb[0].mxu0
        %v2501 = vpop.f32.mrb[0].mxu0
        %v2502 = vadd.f32 0.0, %v2501
        %v2503 = vpop.f32.mrb[0].mxu0
        %2504 = vdwg.mxu0
        %v2507 = vunpack.c.l.b16 %v2153
        %v2508 = vunpack.c.l.b16 %v2154
        %v2509 = vpack.c.b16 %v2508, %v2507
        %v2512 = vsel %vm600, %v2138, 0
        %2514 = vmatprep.subr.bf16.mxu0 0
        %2515 = vmatpush1.bf16.msra.mxu0 %v2509
        %2516 = vmatprep.subr.bf16.mxu0 0
        %2517 = vmatpush1.bf16.msra.mxu0 0
        %2518 = vmatprep.subr.bf16.mxu0 0
        %2519 = vmatpush1.bf16.msra.mxu0 0
        %2520 = vmatprep.subr.bf16.mxu0 0
        %2521 = vmatpush1.bf16.msra.mxu0 0
        %2522 = vmatprep.subr.bf16.mxu0 0
        %2523 = vmatpush1.bf16.msra.mxu0 0
        %2524 = vmatprep.subr.bf16.mxu0 0
        %2525 = vmatpush1.bf16.msra.mxu0 0
        %2526 = vmatprep.subr.bf16.mxu0 0
        %2527 = vmatpush1.bf16.msra.mxu0 0
        %2528 = vmatprep.subr.bf16.mxu0 0
        %2529 = vmatpush1.bf16.msra.mxu0 0
        %2530 = vmatprep.subr.bf16.mxu0 0
        %2531 = vmatpush1.bf16.msra.mxu0 0
        %2532 = vmatprep.subr.bf16.mxu0 0
        %2533 = vmatpush1.bf16.msra.mxu0 0
        %2534 = vmatprep.subr.bf16.mxu0 0
        %2535 = vmatpush1.bf16.msra.mxu0 0
        %2536 = vmatprep.subr.bf16.mxu0 0
        %2537 = vmatpush1.bf16.msra.mxu0 0
        %2538 = vmatprep.subr.bf16.mxu0 0
        %2539 = vmatpush1.bf16.msra.mxu0 0
        %2540 = vmatprep.subr.bf16.mxu0 0
        %2541 = vmatpush1.bf16.msra.mxu0 0
        %2542 = vmatprep.subr.bf16.mxu0 0
        %2543 = vmatpush1.bf16.msra.mxu0 0
        %2544 = vmatprep.subr.bf16.mxu0 0
        %2545 = vmatpush1.bf16.msra.mxu0 0
        %2546 = vmatprep.mubr.bf16.mxu0 0
        %2547 = vmatmul.mubr.bf16.gmra.mrb[0].mxu0 %v2512
        %v2548 = vpop.f32.mrb[0].mxu0
        %v2549 = vadd.f32 0.0, %v2548
        %v2550 = vpop.f32.mrb[0].mxu0
        %v2551 = vpop.f32.mrb[0].mxu0
        %v2552 = vadd.f32 0.0, %v2551
        %v2553 = vpop.f32.mrb[0].mxu0
        %2554 = vdwg.mxu0
        %v2555 = vadd.f32 %v2199, %v2249
        %v2556 = vadd.f32 %v2555, %v2299
        %v2557 = vadd.f32 %v2556, %v2349
        %v2558 = vadd.f32 %v2557, %v2399
        %v2559 = vadd.f32 %v2558, %v2449
        %v2560 = vadd.f32 %v2559, %v2499
        %v2561 = vadd.f32 %v2560, %v2549
        %v2562 = vadd.f32 %v2202, %v2252
        %v2563 = vadd.f32 %v2562, %v2302
        %v2564 = vadd.f32 %v2563, %v2352
        %v2565 = vadd.f32 %v2564, %v2402
        %v2566 = vadd.f32 %v2565, %v2452
        %v2567 = vadd.f32 %v2566, %v2502
        %v2568 = vadd.f32 %v2567, %v2552
        %v2569 = vld [vmem:[%s8] sm:$0x1]
        %v2571 = vlaneseq
        %v2572 = vshrl.u32 %v2571, 7
        %v2573 = vsub.s32 0, %v2572
        %v2574 = vrot.slane %v2569, %v2573
        %v2576 = vadd.f32 %v2561, %v2574
        %v2577 = vadd.f32 %v2568, %v2574
        %2578 = vst [vmem:[%s527] sm:$0xff] %v2576
        %2579 = vst [vmem:[%s527 + $0x8] sm:$0xff] %v2577
        %s2580 = sand.u32 %s255, 1
        %s2581 = scalar_lea.sflag [#allocation4], %s2580
        %s2582 = sand.u32 %s255, 1
        %s2583 = smul.addr %s2582, 16
        %s2584 = scalar_lea.vmem [#allocation13], %s2583
        %s2585 = sand.u32 %s281, 1
        %s2586 = scalar_lea.sflag [#allocation15], %s2585
        %s2587 = sand.u32 %s281, 1
        %s2588 = smul.addr %s2587, 16
        %s2589 = scalar_lea.vmem [#allocation14], %s2588
        // Predicated region
        $region81: #{tpu_custom_call.1} parent=55 // pred_check
          %p2590 = pneg %p265
        $region82: #{tpu_custom_call.1} parent=55 // pred_check_branch
          %2592 = sbr.rel (%p2590) target = $region84
        $region83: #{tpu_custom_call.1} parent=55 // pred_region
          %s2594 = ssub.s32 256, 256
          %2595 = vsyncadd %s2581, %s2594
          %s2596 = smul.addr %s38, 2
          %s2597 = smul.addr %s2596, 128
          %s2598 = scalar_lea.hbm %s9, %s2597
          %s2599 = sshll.u32 %s2584, 4
          %s2600 = int_to_ptr.vmem [resolvable:$true] %s2599
          %2605 = dma.vmem_to_hbm [thread:$0]  %s2600, 256, %s2598, %s2581, 128, 128, 8
        $region84: #{tpu_custom_call.1} parent=55 // pred_fallthru
          _
        // Predicated region
        $region85: #{tpu_custom_call.1} parent=55 // pred_check
          %p2606 = pneg %p291
        $region86: #{tpu_custom_call.1} parent=55 // pred_check_branch
          %2608 = sbr.rel (%p2606) target = $region88
        $region87: #{tpu_custom_call.1} parent=55 // pred_region
          %s2610 = ssub.s32 256, 256
          %2611 = vsyncadd %s2586, %s2610
          %s2612 = smul.addr %s38, 2
          %s2613 = smul.addr %s2612, 128
          %s2614 = scalar_lea.hbm %s10, %s2613
          %s2615 = sshll.u32 %s2589, 4
          %s2616 = int_to_ptr.vmem [resolvable:$true] %s2615
          %2621 = dma.vmem_to_hbm [thread:$0]  %s2616, 256, %s2614, %s2586, 128, 128, 8
        $region88: #{tpu_custom_call.1} parent=55 // pred_fallthru
          _
      $region56: #{tpu_custom_call.1} parent=5 // pred_fallthru
        _
      %p2622 = scmp.le.s32.totalorder 2, %s33
      // Predicated region
      $region89: #{tpu_custom_call.1} parent=5 // pred_check
        %p2623 = pneg %p2622
      $region90: #{tpu_custom_call.1} parent=5 // pred_check_branch
        %2625 = sbr.rel (%p2623) target = $region92
      $region91: #{tpu_custom_call.1} parent=5 // pred_region
        %s2626 = ssub.s32 %s33, 2
        // Predicated region
        $region93: #{tpu_custom_call.1} parent=91 // pred_check
          %p2627 = pneg %p271
        $region94: #{tpu_custom_call.1} parent=91 // pred_check_branch
          %2629 = sbr.rel (%p2627) target = $region96
        $region95: #{tpu_custom_call.1} parent=91 // pred_region
          %s2630 = sand.u32 %s256, 1
          %s2631 = scalar_lea.sflag [#allocation4], %s2630
          %s2632 = sand.u32 %s256, 1
          %s2633 = smul.addr %s2632, 16
          %s2634 = scalar_lea.vmem [#allocation13], %s2633
          %2635 = dma.done %s2631, 256
        $region96: #{tpu_custom_call.1} parent=91 // pred_fallthru
          _
        // Predicated region
        $region97: #{tpu_custom_call.1} parent=91 // pred_check
          %p2636 = pneg %p297
        $region98: #{tpu_custom_call.1} parent=91 // pred_check_branch
          %2638 = sbr.rel (%p2636) target = $region100
        $region99: #{tpu_custom_call.1} parent=91 // pred_region
          %s2639 = sand.u32 %s282, 1
          %s2640 = scalar_lea.sflag [#allocation15], %s2639
          %s2641 = sand.u32 %s282, 1
          %s2642 = smul.addr %s2641, 16
          %s2643 = scalar_lea.vmem [#allocation14], %s2642
          %2644 = dma.done %s2640, 256
        $region100: #{tpu_custom_call.1} parent=91 // pred_fallthru
          _
      $region92: #{tpu_custom_call.1} parent=5 // pred_fallthru
        _
    $region6: #{tpu_custom_call.1} parent=1 // loop_footer
      %s37 = sadd.s32 1, %s33
    $region7: #{tpu_custom_call.1} parent=1 // loop_footer_branch
      %32 = sbr.rel target = $region3
    $region8: #{tpu_custom_call.1} parent=1 // loop_exit
      _
    %2645 = vsyncpa [#allocation3], 1
    %s2646 = scalar_lea.sflag [#allocation3], 1
    %2647 = vsyncpa %s2646, 1
    %2648 = vsyncpa [#allocation6], 1
    %s2649 = scalar_lea.sflag [#allocation6], 1
    %2650 = vsyncpa %s2649, 1
    %2651 = vsyncpa [#allocation9], 1
    %s2652 = scalar_lea.sflag [#allocation9], 1
    %2653 = vsyncpa %s2652, 1
    %2654 = vsyncpa [#allocation12], 1
    %2655 = vsyncpa [#allocation4], 1
    %s2656 = scalar_lea.sflag [#allocation4], 1
    %2657 = vsyncpa %s2656, 1
    %2658 = vsyncpa [#allocation15], 1
    %s2659 = scalar_lea.sflag [#allocation15], 1
    %2660 = vsyncpa %s2659, 1

</llo_original>
